<compile_context>
chip_gen: v5e
topology: v5e:2x2
jax: 0.10.0
libtpu: 0.0.40
codegen_flags: <defaults>
</compile_context>

<pallas_src>
import functools

import jax
import jax.numpy as jnp
from jax.experimental import pallas as pl
from jax.experimental.pallas import tpu as pltpu


_IN = 33
_LATENT = 10
_IN_SLAB = 64      # [ x (33) | eps (10) | pad (21) ]
_OUT_SLAB = 128    # [ decoder (33) | mean (10) | log_var (10) | pad (75) ]

ENC_DIMS = [(33, 512), (512, 256), (256, 64), (64, 16), (16, 10)]
DEC_DIMS = [(10, 16), (16, 64), (64, 256), (256, 512), (512, 33)]


# --------------------------------------------------------------------------- kernel
def _vae_kernel(
    slab_ref,                                             # [TM, 64]  x || eps
    ew1, eb1, ew2, eb2, ew3, eb3, ew4, eb4,               # encoder hidden stack
    hw, hb,                                               # folded enc5 + mean||log_var (16 -> 20)
    dw1, db1, dw2, db2, dw3, db3, dw4, db4, dw5, db5,     # decoder
    out_ref,                                              # [TM, 128] packed output slab
    *, bf16_epilogue,
):
    def matmul(h, w_ref, b_ref):
        # bf16 x bf16 on the MXU, f32 accumulate, f32 bias add on the VPU.
        return (
            jnp.dot(h.astype(jnp.bfloat16), w_ref[...],
                    preferred_element_type=jnp.float32)
            + b_ref[...]
        )

    def hidden(h, w_ref, b_ref):
        y = matmul(h, w_ref, b_ref)
        if bf16_epilogue:
            # cast before ReLU: next matmul needs bf16 anyway; ReLU touches half the vregs.
            y = y.astype(jnp.bfloat16)
        return jnp.maximum(y, 0.0)

    x = slab_ref[:, 0:_IN]
    eps = slab_ref[:, _IN:_IN + _LATENT]

    # ---- encoder hidden stack: 33 -> 512 -> 256 -> 64 -> 16 (ReLU after each) ----
    h = hidden(x, ew1, eb1)
    h = hidden(h, ew2, eb2)
    h = hidden(h, ew3, eb3)
    h = hidden(h, ew4, eb4)

    # ---- folded encoder tail + mean||log_var head: 16 -> 20, then slice ----
    head = matmul(h, hw, hb)                      # [TM, 20] f32
    mean = head[:, :_LATENT]
    log_var = head[:, _LATENT:2 * _LATENT]

    # ---- reparameterize (f32 exp on the EUP): z = mean + exp(0.5*log_var) * eps ----
    z = mean + jnp.exp(0.5 * log_var) * eps

    # ---- decoder: 10 -> 16 -> 64 -> 256 -> 512 -> 33 (ReLU between) ----
    h = hidden(z, dw1, db1)
    h = hidden(h, dw2, db2)
    h = hidden(h, dw3, db3)
    h = hidden(h, dw4, db4)
    out = matmul(h, dw5, db5)                     # [TM, 33] f32

    # ---- pack [decoder | mean | log_var | pad] and store once (128 lanes, unmasked) ----
    pad = jnp.zeros((out.shape[0], _OUT_SLAB - _IN - 2 * _LATENT), jnp.float32)
    out_ref[...] = jnp.concatenate([out, mean, log_var, pad], axis=-1)


# --------------------------------------------------------------------------- wrapper
def _round_up(n, m):
    return ((n + m - 1) // m) * m


def _device_kind():
    try:
        return jax.devices()[0].device_kind.lower()
    except Exception:
        return ""


def variational_forward(x, eps, kernel_params, *, block_m=1024,
                        bf16_epilogue=None, num_cores=None):
    """x: [B, 33] f32, eps: [B, 10] f32.
    kernel_params: flat list [W, b, ...] (10 layers): 4 encoder layers, folded head,
    5 decoder layers; W bf16 [in, out], b f32 [1, out]."""
    if bf16_epilogue is None:
        bf16_epilogue = "v5" not in _device_kind()   # v5e: no bf16 VPU path
    if num_cores is None:
        num_cores = 2 if "v7" in _device_kind() else 1

    B = x.shape[0]
    TM = min(block_m, _round_up(B, 8))
    if num_cores > 1 and B >= 16:
        # ensure >= 2 grid steps so the "parallel" batch axis uses both TensorCores
        TM = min(TM, _round_up(-(-B // num_cores), 8))
    Bp = _round_up(B, TM)

    # Pack x and eps into one lane slab (padded batch rows are zero -> finite everywhere).
    slab_in = jnp.zeros((Bp, _IN_SLAB), jnp.float32)
    slab_in = slab_in.at[:B, :_IN].set(x)
    slab_in = slab_in.at[:B, _IN:_IN + _LATENT].set(eps)

    # Weights/biases: full-array blocks, index_map pinned to (0, 0) -> VMEM-resident
    # across the batch grid (fetched once, not per grid step).
    param_specs = [pl.BlockSpec(p.shape, lambda i: (0, 0)) for p in kernel_params]
    in_specs = [pl.BlockSpec((TM, _IN_SLAB), lambda i: (i, 0))] + param_specs
    out_specs = pl.BlockSpec((TM, _OUT_SLAB), lambda i: (i, 0))

    kernel = functools.partial(_vae_kernel, bf16_epilogue=bf16_epilogue)

    slab_out = pl.pallas_call(
        kernel,
        out_shape=jax.ShapeDtypeStruct((Bp, _OUT_SLAB), jnp.float32),
        grid=(Bp // TM,),
        in_specs=in_specs,
        out_specs=out_specs,
        compiler_params=pltpu.CompilerParams(
            dimension_semantics=("parallel",),        # shards batch tiles across v7x's 2 TCs
            vmem_limit_bytes=32 * 1024 * 1024,        # ~0.7 MB bf16 weights + tiles << 32 MiB
        ),
    )(slab_in, *kernel_params)

    out = slab_out[:B, 0:_IN]
    mean = slab_out[:B, _IN:_IN + _LATENT]
    log_var = slab_out[:B, _IN + _LATENT:_IN + 2 * _LATENT]
    return out, mean, log_var


# --------------------------------------------------------------------------- params
def _init_linear(key, fan_in, fan_out):
    # PyTorch nn.Linear default init: uniform(-1/sqrt(fan_in), 1/sqrt(fan_in)).
    kw, kb = jax.random.split(key)
    bound = float(fan_in) ** -0.5
    w = jax.random.uniform(kw, (fan_in, fan_out), jnp.float32, -bound, bound)
    b = jax.random.uniform(kb, (1, fan_out), jnp.float32, -bound, bound)
    return w, b


def init_module_params(key):
    """Faithful (f32) parameters of the PyTorch module."""
    keys = jax.random.split(key, len(ENC_DIMS) + 2 + len(DEC_DIMS))
    it = iter(keys)
    enc = [_init_linear(next(it), fi, fo) for fi, fo in ENC_DIMS]
    mean = _init_linear(next(it), _LATENT, _LATENT)
    log_var = _init_linear(next(it), _LATENT, _LATENT)
    dec = [_init_linear(next(it), fi, fo) for fi, fo in DEC_DIMS]
    return {"encoder": enc, "mean": mean, "log_var": log_var, "decoder": dec}


def prep_kernel_params(p):
    """Fold encoder layer 5 + [mean || log_var] into one 16->20 affine (exact in f32,
    no nonlinearity between); cast all weights to bf16, keep biases f32."""
    enc, dec = p["encoder"], p["decoder"]
    wm, bm = p["mean"]
    wlv, blv = p["log_var"]
    wh = jnp.concatenate([wm, wlv], axis=1)        # (10, 20)
    bh = jnp.concatenate([bm, blv], axis=1)        # (1, 20)
    w5, b5 = enc[-1]                               # (16, 10), (1, 10)
    w_fold = jnp.dot(w5, wh)                       # (16, 20)
    b_fold = jnp.dot(b5, wh) + bh                  # (1, 20)

    flat = []
    for w, b in enc[:-1]:
        flat += [w.astype(jnp.bfloat16), b]
    flat += [w_fold.astype(jnp.bfloat16), b_fold]
    for w, b in dec:
        flat += [w.astype(jnp.bfloat16), b]
    return flat


# --------------------------------------------------------------------------- reference
def _reference(x, eps, module_params):
    """Pure-JAX reference with the module's exact structure (unfolded head) and the
    same bf16-weight / f32-accumulate numerics."""
    def lin(h, w, b):
        return (
            jnp.dot(h.astype(jnp.bfloat16), w.astype(jnp.bfloat16),
                    preferred_element_type=jnp.float32)
            + b
        )

    p = module_params
    h = x
    for w, b in p["encoder"][:-1]:
        h = jnp.maximum(lin(h, w, b), 0.0)
    latent = lin(h, *p["encoder"][-1])
    mean = lin(latent, *p["mean"])
    log_var = lin(latent, *p["log_var"])
    z = mean + jnp.exp(0.5 * log_var) * eps
    h = z
    for w, b in p["decoder"][:-1]:
        h = jnp.maximum(lin(h, w, b), 0.0)
    out = lin(h, *p["decoder"][-1])
    return out, mean, log_var


# --------------------------------------------------------------------------- main
if __name__ == "__main__":
    key = jax.random.PRNGKey(0)
    k_param, k_x, k_eps = jax.random.split(key, 3)

    B = 8
    x = jax.random.normal(k_x, (B, _IN), jnp.float32)
    # torch.randn_like epsilon generated deterministically outside the kernel so the
    # reparameterization is reproducible and checkable against the reference.
    eps = jax.random.normal(k_eps, (B, _LATENT), jnp.float32)

    module_params = init_module_params(k_param)
    kernel_params = prep_kernel_params(module_params)

    fwd = jax.jit(variational_forward)
    out, mean, log_var = jax.block_until_ready(fwd(x, eps, kernel_params))

    ref_out, ref_mean, ref_logvar = _reference(x, eps, module_params)
    # bf16 weights + head-fold rounding -> relaxed tolerance vs. the bf16 reference.
    assert out.shape == (B, _IN) and mean.shape == (B, _LATENT) and log_var.shape == (B, _LATENT)
    assert jnp.allclose(out, ref_out, atol=2e-2, rtol=2e-2)
    assert jnp.allclose(mean, ref_mean, atol=2e-2, rtol=2e-2)
    assert jnp.allclose(log_var, ref_logvar, atol=2e-2, rtol=2e-2)

    print("KERNEL_OK")
</pallas_src>

<mosaic_0001>
module attributes {stable_mosaic.version = 11 : i64} {
  func.func @_vae_kernel(%arg0: i32, %arg1: memref<8x64xf32, #tpu.memory_space<vmem>>, %arg2: memref<33x512xbf16, #tpu.memory_space<vmem>>, %arg3: memref<1x512xf32, #tpu.memory_space<vmem>>, %arg4: memref<512x256xbf16, #tpu.memory_space<vmem>>, %arg5: memref<1x256xf32, #tpu.memory_space<vmem>>, %arg6: memref<256x64xbf16, #tpu.memory_space<vmem>>, %arg7: memref<1x64xf32, #tpu.memory_space<vmem>>, %arg8: memref<64x16xbf16, #tpu.memory_space<vmem>>, %arg9: memref<1x16xf32, #tpu.memory_space<vmem>>, %arg10: memref<16x20xbf16, #tpu.memory_space<vmem>>, %arg11: memref<1x20xf32, #tpu.memory_space<vmem>>, %arg12: memref<10x16xbf16, #tpu.memory_space<vmem>>, %arg13: memref<1x16xf32, #tpu.memory_space<vmem>>, %arg14: memref<16x64xbf16, #tpu.memory_space<vmem>>, %arg15: memref<1x64xf32, #tpu.memory_space<vmem>>, %arg16: memref<64x256xbf16, #tpu.memory_space<vmem>>, %arg17: memref<1x256xf32, #tpu.memory_space<vmem>>, %arg18: memref<256x512xbf16, #tpu.memory_space<vmem>>, %arg19: memref<1x512xf32, #tpu.memory_space<vmem>>, %arg20: memref<512x33xbf16, #tpu.memory_space<vmem>>, %arg21: memref<1x33xf32, #tpu.memory_space<vmem>>, %arg22: memref<8x128xf32, #tpu.memory_space<vmem>>) attributes {dimension_semantics = [#tpu.dimension_semantics<parallel>], iteration_bounds = array<i64: 1>, scalar_prefetch = 0 : i64, scratch_operands = 0 : i64, tpu.core_type = #tpu.core_type<tc>, window_params = [{transform_indices = @transform_0, window_bounds = array<i64: 8, 64>}, {pipeline_mode = #tpu.pipeline_mode<synchronous>, transform_indices = @transform_1, window_bounds = array<i64: 33, 512>}, {pipeline_mode = #tpu.pipeline_mode<synchronous>, transform_indices = @transform_2, window_bounds = array<i64: 1, 512>}, {pipeline_mode = #tpu.pipeline_mode<synchronous>, transform_indices = @transform_3, window_bounds = array<i64: 512, 256>}, {pipeline_mode = #tpu.pipeline_mode<synchronous>, transform_indices = @transform_4, window_bounds = array<i64: 1, 256>}, {pipeline_mode = #tpu.pipeline_mode<synchronous>, transform_indices = @transform_5, window_bounds = array<i64: 256, 64>}, {pipeline_mode = #tpu.pipeline_mode<synchronous>, transform_indices = @transform_6, window_bounds = array<i64: 1, 64>}, {pipeline_mode = #tpu.pipeline_mode<synchronous>, transform_indices = @transform_7, window_bounds = array<i64: 64, 16>}, {pipeline_mode = #tpu.pipeline_mode<synchronous>, transform_indices = @transform_8, window_bounds = array<i64: 1, 16>}, {pipeline_mode = #tpu.pipeline_mode<synchronous>, transform_indices = @transform_9, window_bounds = array<i64: 16, 20>}, {pipeline_mode = #tpu.pipeline_mode<synchronous>, transform_indices = @transform_10, window_bounds = array<i64: 1, 20>}, {pipeline_mode = #tpu.pipeline_mode<synchronous>, transform_indices = @transform_11, window_bounds = array<i64: 10, 16>}, {pipeline_mode = #tpu.pipeline_mode<synchronous>, transform_indices = @transform_12, window_bounds = array<i64: 1, 16>}, {pipeline_mode = #tpu.pipeline_mode<synchronous>, transform_indices = @transform_13, window_bounds = array<i64: 16, 64>}, {pipeline_mode = #tpu.pipeline_mode<synchronous>, transform_indices = @transform_14, window_bounds = array<i64: 1, 64>}, {pipeline_mode = #tpu.pipeline_mode<synchronous>, transform_indices = @transform_15, window_bounds = array<i64: 64, 256>}, {pipeline_mode = #tpu.pipeline_mode<synchronous>, transform_indices = @transform_16, window_bounds = array<i64: 1, 256>}, {pipeline_mode = #tpu.pipeline_mode<synchronous>, transform_indices = @transform_17, window_bounds = array<i64: 256, 512>}, {pipeline_mode = #tpu.pipeline_mode<synchronous>, transform_indices = @transform_18, window_bounds = array<i64: 1, 512>}, {pipeline_mode = #tpu.pipeline_mode<synchronous>, transform_indices = @transform_19, window_bounds = array<i64: 512, 33>}, {pipeline_mode = #tpu.pipeline_mode<synchronous>, transform_indices = @transform_20, window_bounds = array<i64: 1, 33>}, {transform_indices = @transform_21, window_bounds = array<i64: 8, 128>}]} {
    %c0 = arith.constant 0 : index
    %c0_0 = arith.constant 0 : index
    %0 = vector.load %arg1[%c0, %c0_0] : memref<8x64xf32, #tpu.memory_space<vmem>>, vector<8x33xf32>
    %c0_1 = arith.constant 0 : index
    %c33 = arith.constant 33 : index
    %1 = vector.load %arg1[%c0_1, %c33] : memref<8x64xf32, #tpu.memory_space<vmem>>, vector<8x10xf32>
    %2 = arith.truncf %0 : vector<8x33xf32> to vector<8x33xbf16>
    %c0_2 = arith.constant 0 : index
    %c0_3 = arith.constant 0 : index
    %3 = vector.load %arg2[%c0_2, %c0_3] : memref<33x512xbf16, #tpu.memory_space<vmem>>, vector<33x512xbf16>
    %cst = arith.constant dense<0.000000e+00> : vector<8x512xf32>
    %4 = tpu.matmul %2, %3, %cst {dimension_numbers = #tpu.dot_dimension_numbers<[1], [0], [0], [1], [0, 0, 1, 1], [], []>} : vector<8x33xbf16>, vector<33x512xbf16>, vector<8x512xf32> -> vector<8x512xf32>
    %c0_4 = arith.constant 0 : index
    %c0_5 = arith.constant 0 : index
    %5 = vector.load %arg3[%c0_4, %c0_5] : memref<1x512xf32, #tpu.memory_space<vmem>>, vector<1x512xf32>
    %6 = vector.broadcast %5 : vector<1x512xf32> to vector<8x512xf32>
    %7 = arith.addf %4, %6 : vector<8x512xf32>
    %8 = arith.truncf %7 : vector<8x512xf32> to vector<8x512xbf16>
    %cst_6 = arith.constant 0.000000e+00 : bf16
    %9 = vector.broadcast %cst_6 : bf16 to vector<8x512xbf16>
    %10 = arith.maximumf %8, %9 : vector<8x512xbf16>
    %c0_7 = arith.constant 0 : index
    %c0_8 = arith.constant 0 : index
    %11 = vector.load %arg4[%c0_7, %c0_8] : memref<512x256xbf16, #tpu.memory_space<vmem>>, vector<512x256xbf16>
    %cst_9 = arith.constant dense<0.000000e+00> : vector<8x256xf32>
    %12 = tpu.matmul %10, %11, %cst_9 {dimension_numbers = #tpu.dot_dimension_numbers<[1], [0], [0], [1], [0, 0, 1, 1], [], []>} : vector<8x512xbf16>, vector<512x256xbf16>, vector<8x256xf32> -> vector<8x256xf32>
    %c0_10 = arith.constant 0 : index
    %c0_11 = arith.constant 0 : index
    %13 = vector.load %arg5[%c0_10, %c0_11] : memref<1x256xf32, #tpu.memory_space<vmem>>, vector<1x256xf32>
    %14 = vector.broadcast %13 : vector<1x256xf32> to vector<8x256xf32>
    %15 = arith.addf %12, %14 : vector<8x256xf32>
    %16 = arith.truncf %15 : vector<8x256xf32> to vector<8x256xbf16>
    %cst_12 = arith.constant 0.000000e+00 : bf16
    %17 = vector.broadcast %cst_12 : bf16 to vector<8x256xbf16>
    %18 = arith.maximumf %16, %17 : vector<8x256xbf16>
    %c0_13 = arith.constant 0 : index
    %c0_14 = arith.constant 0 : index
    %19 = vector.load %arg6[%c0_13, %c0_14] : memref<256x64xbf16, #tpu.memory_space<vmem>>, vector<256x64xbf16>
    %cst_15 = arith.constant dense<0.000000e+00> : vector<8x64xf32>
    %20 = tpu.matmul %18, %19, %cst_15 {dimension_numbers = #tpu.dot_dimension_numbers<[1], [0], [0], [1], [0, 0, 1, 1], [], []>} : vector<8x256xbf16>, vector<256x64xbf16>, vector<8x64xf32> -> vector<8x64xf32>
    %c0_16 = arith.constant 0 : index
    %c0_17 = arith.constant 0 : index
    %21 = vector.load %arg7[%c0_16, %c0_17] : memref<1x64xf32, #tpu.memory_space<vmem>>, vector<1x64xf32>
    %22 = vector.broadcast %21 : vector<1x64xf32> to vector<8x64xf32>
    %23 = arith.addf %20, %22 : vector<8x64xf32>
    %24 = arith.truncf %23 : vector<8x64xf32> to vector<8x64xbf16>
    %cst_18 = arith.constant 0.000000e+00 : bf16
    %25 = vector.broadcast %cst_18 : bf16 to vector<8x64xbf16>
    %26 = arith.maximumf %24, %25 : vector<8x64xbf16>
    %c0_19 = arith.constant 0 : index
    %c0_20 = arith.constant 0 : index
    %27 = vector.load %arg8[%c0_19, %c0_20] : memref<64x16xbf16, #tpu.memory_space<vmem>>, vector<64x16xbf16>
    %cst_21 = arith.constant dense<0.000000e+00> : vector<8x16xf32>
    %28 = tpu.matmul %26, %27, %cst_21 {dimension_numbers = #tpu.dot_dimension_numbers<[1], [0], [0], [1], [0, 0, 1, 1], [], []>} : vector<8x64xbf16>, vector<64x16xbf16>, vector<8x16xf32> -> vector<8x16xf32>
    %c0_22 = arith.constant 0 : index
    %c0_23 = arith.constant 0 : index
    %29 = vector.load %arg9[%c0_22, %c0_23] : memref<1x16xf32, #tpu.memory_space<vmem>>, vector<1x16xf32>
    %30 = vector.broadcast %29 : vector<1x16xf32> to vector<8x16xf32>
    %31 = arith.addf %28, %30 : vector<8x16xf32>
    %32 = arith.truncf %31 : vector<8x16xf32> to vector<8x16xbf16>
    %cst_24 = arith.constant 0.000000e+00 : bf16
    %33 = vector.broadcast %cst_24 : bf16 to vector<8x16xbf16>
    %34 = arith.maximumf %32, %33 : vector<8x16xbf16>
    %c0_25 = arith.constant 0 : index
    %c0_26 = arith.constant 0 : index
    %35 = vector.load %arg10[%c0_25, %c0_26] : memref<16x20xbf16, #tpu.memory_space<vmem>>, vector<16x20xbf16>
    %cst_27 = arith.constant dense<0.000000e+00> : vector<8x20xf32>
    %36 = tpu.matmul %34, %35, %cst_27 {dimension_numbers = #tpu.dot_dimension_numbers<[1], [0], [0], [1], [0, 0, 1, 1], [], []>} : vector<8x16xbf16>, vector<16x20xbf16>, vector<8x20xf32> -> vector<8x20xf32>
    %c0_28 = arith.constant 0 : index
    %c0_29 = arith.constant 0 : index
    %37 = vector.load %arg11[%c0_28, %c0_29] : memref<1x20xf32, #tpu.memory_space<vmem>>, vector<1x20xf32>
    %38 = vector.broadcast %37 : vector<1x20xf32> to vector<8x20xf32>
    %39 = arith.addf %36, %38 : vector<8x20xf32>
    %40 = vector.extract_strided_slice %39 {offsets = [0, 0], sizes = [8, 10], strides = [1, 1]} : vector<8x20xf32> to vector<8x10xf32>
    %41 = vector.extract_strided_slice %39 {offsets = [0, 10], sizes = [8, 10], strides = [1, 1]} : vector<8x20xf32> to vector<8x10xf32>
    %cst_30 = arith.constant 5.000000e-01 : f32
    %42 = vector.broadcast %cst_30 : f32 to vector<8x10xf32>
    %43 = arith.mulf %42, %41 : vector<8x10xf32>
    %44 = math.exp %43 : vector<8x10xf32>
    %45 = arith.mulf %44, %1 : vector<8x10xf32>
    %46 = arith.addf %40, %45 : vector<8x10xf32>
    %47 = arith.truncf %46 : vector<8x10xf32> to vector<8x10xbf16>
    %c0_31 = arith.constant 0 : index
    %c0_32 = arith.constant 0 : index
    %48 = vector.load %arg12[%c0_31, %c0_32] : memref<10x16xbf16, #tpu.memory_space<vmem>>, vector<10x16xbf16>
    %cst_33 = arith.constant dense<0.000000e+00> : vector<8x16xf32>
    %49 = tpu.matmul %47, %48, %cst_33 {dimension_numbers = #tpu.dot_dimension_numbers<[1], [0], [0], [1], [0, 0, 1, 1], [], []>} : vector<8x10xbf16>, vector<10x16xbf16>, vector<8x16xf32> -> vector<8x16xf32>
    %c0_34 = arith.constant 0 : index
    %c0_35 = arith.constant 0 : index
    %50 = vector.load %arg13[%c0_34, %c0_35] : memref<1x16xf32, #tpu.memory_space<vmem>>, vector<1x16xf32>
    %51 = vector.broadcast %50 : vector<1x16xf32> to vector<8x16xf32>
    %52 = arith.addf %49, %51 : vector<8x16xf32>
    %53 = arith.truncf %52 : vector<8x16xf32> to vector<8x16xbf16>
    %cst_36 = arith.constant 0.000000e+00 : bf16
    %54 = vector.broadcast %cst_36 : bf16 to vector<8x16xbf16>
    %55 = arith.maximumf %53, %54 : vector<8x16xbf16>
    %c0_37 = arith.constant 0 : index
    %c0_38 = arith.constant 0 : index
    %56 = vector.load %arg14[%c0_37, %c0_38] : memref<16x64xbf16, #tpu.memory_space<vmem>>, vector<16x64xbf16>
    %cst_39 = arith.constant dense<0.000000e+00> : vector<8x64xf32>
    %57 = tpu.matmul %55, %56, %cst_39 {dimension_numbers = #tpu.dot_dimension_numbers<[1], [0], [0], [1], [0, 0, 1, 1], [], []>} : vector<8x16xbf16>, vector<16x64xbf16>, vector<8x64xf32> -> vector<8x64xf32>
    %c0_40 = arith.constant 0 : index
    %c0_41 = arith.constant 0 : index
    %58 = vector.load %arg15[%c0_40, %c0_41] : memref<1x64xf32, #tpu.memory_space<vmem>>, vector<1x64xf32>
    %59 = vector.broadcast %58 : vector<1x64xf32> to vector<8x64xf32>
    %60 = arith.addf %57, %59 : vector<8x64xf32>
    %61 = arith.truncf %60 : vector<8x64xf32> to vector<8x64xbf16>
    %cst_42 = arith.constant 0.000000e+00 : bf16
    %62 = vector.broadcast %cst_42 : bf16 to vector<8x64xbf16>
    %63 = arith.maximumf %61, %62 : vector<8x64xbf16>
    %c0_43 = arith.constant 0 : index
    %c0_44 = arith.constant 0 : index
    %64 = vector.load %arg16[%c0_43, %c0_44] : memref<64x256xbf16, #tpu.memory_space<vmem>>, vector<64x256xbf16>
    %cst_45 = arith.constant dense<0.000000e+00> : vector<8x256xf32>
    %65 = tpu.matmul %63, %64, %cst_45 {dimension_numbers = #tpu.dot_dimension_numbers<[1], [0], [0], [1], [0, 0, 1, 1], [], []>} : vector<8x64xbf16>, vector<64x256xbf16>, vector<8x256xf32> -> vector<8x256xf32>
    %c0_46 = arith.constant 0 : index
    %c0_47 = arith.constant 0 : index
    %66 = vector.load %arg17[%c0_46, %c0_47] : memref<1x256xf32, #tpu.memory_space<vmem>>, vector<1x256xf32>
    %67 = vector.broadcast %66 : vector<1x256xf32> to vector<8x256xf32>
    %68 = arith.addf %65, %67 : vector<8x256xf32>
    %69 = arith.truncf %68 : vector<8x256xf32> to vector<8x256xbf16>
    %cst_48 = arith.constant 0.000000e+00 : bf16
    %70 = vector.broadcast %cst_48 : bf16 to vector<8x256xbf16>
    %71 = arith.maximumf %69, %70 : vector<8x256xbf16>
    %c0_49 = arith.constant 0 : index
    %c0_50 = arith.constant 0 : index
    %72 = vector.load %arg18[%c0_49, %c0_50] : memref<256x512xbf16, #tpu.memory_space<vmem>>, vector<256x512xbf16>
    %cst_51 = arith.constant dense<0.000000e+00> : vector<8x512xf32>
    %73 = tpu.matmul %71, %72, %cst_51 {dimension_numbers = #tpu.dot_dimension_numbers<[1], [0], [0], [1], [0, 0, 1, 1], [], []>} : vector<8x256xbf16>, vector<256x512xbf16>, vector<8x512xf32> -> vector<8x512xf32>
    %c0_52 = arith.constant 0 : index
    %c0_53 = arith.constant 0 : index
    %74 = vector.load %arg19[%c0_52, %c0_53] : memref<1x512xf32, #tpu.memory_space<vmem>>, vector<1x512xf32>
    %75 = vector.broadcast %74 : vector<1x512xf32> to vector<8x512xf32>
    %76 = arith.addf %73, %75 : vector<8x512xf32>
    %77 = arith.truncf %76 : vector<8x512xf32> to vector<8x512xbf16>
    %cst_54 = arith.constant 0.000000e+00 : bf16
    %78 = vector.broadcast %cst_54 : bf16 to vector<8x512xbf16>
    %79 = arith.maximumf %77, %78 : vector<8x512xbf16>
    %c0_55 = arith.constant 0 : index
    %c0_56 = arith.constant 0 : index
    %80 = vector.load %arg20[%c0_55, %c0_56] : memref<512x33xbf16, #tpu.memory_space<vmem>>, vector<512x33xbf16>
    %cst_57 = arith.constant dense<0.000000e+00> : vector<8x33xf32>
    %81 = tpu.matmul %79, %80, %cst_57 {dimension_numbers = #tpu.dot_dimension_numbers<[1], [0], [0], [1], [0, 0, 1, 1], [], []>} : vector<8x512xbf16>, vector<512x33xbf16>, vector<8x33xf32> -> vector<8x33xf32>
    %c0_58 = arith.constant 0 : index
    %c0_59 = arith.constant 0 : index
    %82 = vector.load %arg21[%c0_58, %c0_59] : memref<1x33xf32, #tpu.memory_space<vmem>>, vector<1x33xf32>
    %83 = vector.broadcast %82 : vector<1x33xf32> to vector<8x33xf32>
    %84 = arith.addf %81, %83 : vector<8x33xf32>
    %cst_60 = arith.constant 0.000000e+00 : f32
    %85 = vector.broadcast %cst_60 : f32 to vector<8x75xf32>
    %86 = tpu.concatenate %84, %40, %41, %85 in 1 : vector<8x33xf32>, vector<8x10xf32>, vector<8x10xf32>, vector<8x75xf32> -> vector<8x128xf32>
    %c0_61 = arith.constant 0 : index
    %c0_62 = arith.constant 0 : index
    %87 = vector.load %arg22[%c0_61, %c0_62] : memref<8x128xf32, #tpu.memory_space<vmem>>, vector<8x128xf32>
    tpu.vector_store %arg22[%c0_61, %c0_62], %86 {strides = array<i32>} : memref<8x128xf32, #tpu.memory_space<vmem>>, vector<8x128xf32>,
    return
  }
  func.func @transform_0(%arg0: i32) -> (i32, i32) {
    %c0_i32 = arith.constant 0 : i32
    %c0_i32_0 = arith.constant 0 : i32
    return %arg0, %c0_i32 : i32, i32
  }
  func.func @transform_1(%arg0: i32) -> (i32, i32) {
    %c0_i32 = arith.constant 0 : i32
    %c0_i32_0 = arith.constant 0 : i32
    %c0_i32_1 = arith.constant 0 : i32
    return %c0_i32, %c0_i32_0 : i32, i32
  }
  func.func @transform_2(%arg0: i32) -> (i32, i32) {
    %c0_i32 = arith.constant 0 : i32
    %c0_i32_0 = arith.constant 0 : i32
    %c0_i32_1 = arith.constant 0 : i32
    return %c0_i32, %c0_i32_0 : i32, i32
  }
  func.func @transform_3(%arg0: i32) -> (i32, i32) {
    %c0_i32 = arith.constant 0 : i32
    %c0_i32_0 = arith.constant 0 : i32
    %c0_i32_1 = arith.constant 0 : i32
    return %c0_i32, %c0_i32_0 : i32, i32
  }
  func.func @transform_4(%arg0: i32) -> (i32, i32) {
    %c0_i32 = arith.constant 0 : i32
    %c0_i32_0 = arith.constant 0 : i32
    %c0_i32_1 = arith.constant 0 : i32
    return %c0_i32, %c0_i32_0 : i32, i32
  }
  func.func @transform_5(%arg0: i32) -> (i32, i32) {
    %c0_i32 = arith.constant 0 : i32
    %c0_i32_0 = arith.constant 0 : i32
    %c0_i32_1 = arith.constant 0 : i32
    return %c0_i32, %c0_i32_0 : i32, i32
  }
  func.func @transform_6(%arg0: i32) -> (i32, i32) {
    %c0_i32 = arith.constant 0 : i32
    %c0_i32_0 = arith.constant 0 : i32
    %c0_i32_1 = arith.constant 0 : i32
    return %c0_i32, %c0_i32_0 : i32, i32
  }
  func.func @transform_7(%arg0: i32) -> (i32, i32) {
    %c0_i32 = arith.constant 0 : i32
    %c0_i32_0 = arith.constant 0 : i32
    %c0_i32_1 = arith.constant 0 : i32
    return %c0_i32, %c0_i32_0 : i32, i32
  }
  func.func @transform_8(%arg0: i32) -> (i32, i32) {
    %c0_i32 = arith.constant 0 : i32
    %c0_i32_0 = arith.constant 0 : i32
    %c0_i32_1 = arith.constant 0 : i32
    return %c0_i32, %c0_i32_0 : i32, i32
  }
  func.func @transform_9(%arg0: i32) -> (i32, i32) {
    %c0_i32 = arith.constant 0 : i32
    %c0_i32_0 = arith.constant 0 : i32
    %c0_i32_1 = arith.constant 0 : i32
    return %c0_i32, %c0_i32_0 : i32, i32
  }
  func.func @transform_10(%arg0: i32) -> (i32, i32) {
    %c0_i32 = arith.constant 0 : i32
    %c0_i32_0 = arith.constant 0 : i32
    %c0_i32_1 = arith.constant 0 : i32
    return %c0_i32, %c0_i32_0 : i32, i32
  }
  func.func @transform_11(%arg0: i32) -> (i32, i32) {
    %c0_i32 = arith.constant 0 : i32
    %c0_i32_0 = arith.constant 0 : i32
    %c0_i32_1 = arith.constant 0 : i32
    return %c0_i32, %c0_i32_0 : i32, i32
  }
  func.func @transform_12(%arg0: i32) -> (i32, i32) {
    %c0_i32 = arith.constant 0 : i32
    %c0_i32_0 = arith.constant 0 : i32
    %c0_i32_1 = arith.constant 0 : i32
    return %c0_i32, %c0_i32_0 : i32, i32
  }
  func.func @transform_13(%arg0: i32) -> (i32, i32) {
    %c0_i32 = arith.constant 0 : i32
    %c0_i32_0 = arith.constant 0 : i32
    %c0_i32_1 = arith.constant 0 : i32
    return %c0_i32, %c0_i32_0 : i32, i32
  }
  func.func @transform_14(%arg0: i32) -> (i32, i32) {
    %c0_i32 = arith.constant 0 : i32
    %c0_i32_0 = arith.constant 0 : i32
    %c0_i32_1 = arith.constant 0 : i32
    return %c0_i32, %c0_i32_0 : i32, i32
  }
  func.func @transform_15(%arg0: i32) -> (i32, i32) {
    %c0_i32 = arith.constant 0 : i32
    %c0_i32_0 = arith.constant 0 : i32
    %c0_i32_1 = arith.constant 0 : i32
    return %c0_i32, %c0_i32_0 : i32, i32
  }
  func.func @transform_16(%arg0: i32) -> (i32, i32) {
    %c0_i32 = arith.constant 0 : i32
    %c0_i32_0 = arith.constant 0 : i32
    %c0_i32_1 = arith.constant 0 : i32
    return %c0_i32, %c0_i32_0 : i32, i32
  }
  func.func @transform_17(%arg0: i32) -> (i32, i32) {
    %c0_i32 = arith.constant 0 : i32
    %c0_i32_0 = arith.constant 0 : i32
    %c0_i32_1 = arith.constant 0 : i32
    return %c0_i32, %c0_i32_0 : i32, i32
  }
  func.func @transform_18(%arg0: i32) -> (i32, i32) {
    %c0_i32 = arith.constant 0 : i32
    %c0_i32_0 = arith.constant 0 : i32
    %c0_i32_1 = arith.constant 0 : i32
    return %c0_i32, %c0_i32_0 : i32, i32
  }
  func.func @transform_19(%arg0: i32) -> (i32, i32) {
    %c0_i32 = arith.constant 0 : i32
    %c0_i32_0 = arith.constant 0 : i32
    %c0_i32_1 = arith.constant 0 : i32
    return %c0_i32, %c0_i32_0 : i32, i32
  }
  func.func @transform_20(%arg0: i32) -> (i32, i32) {
    %c0_i32 = arith.constant 0 : i32
    %c0_i32_0 = arith.constant 0 : i32
    %c0_i32_1 = arith.constant 0 : i32
    return %c0_i32, %c0_i32_0 : i32, i32
  }
  func.func @transform_21(%arg0: i32) -> (i32, i32) {
    %c0_i32 = arith.constant 0 : i32
    %c0_i32_0 = arith.constant 0 : i32
    return %arg0, %c0_i32 : i32, i32
  }
}

</mosaic_0001>

<llo_original>
// kernel: variational_forward.1
$region0: #{variational_forward.1}
  #allocation0 [shape = 'u32[]', space=smem, size = 0x4, offset = 0x4, fixed_abs, tag = 'smem constant byte address 0x4 - core index']
  #allocation1 [shape = 'u32[72,128]{1,0:T(1,128)}', space=vmem, size = 0x9000, scoped, tag = 'internal scratch']
  %s0 = inlined_call_operand.vmem [shape: f32[8,64], index: 0, kind: input, shape index: {}]
  %s1 = inlined_call_operand.vmem [shape: bf16[33,512], index: 1, kind: input, shape index: {}]
  %s2 = inlined_call_operand.vmem [shape: f32[1,512], index: 2, kind: input, shape index: {}]
  %s3 = inlined_call_operand.hbm [shape: bf16[512,256], index: 3, kind: input, shape index: {}]
  %s4 = inlined_call_operand.vmem [shape: f32[1,256], index: 4, kind: input, shape index: {}]
  %s5 = inlined_call_operand.vmem [shape: bf16[256,64], index: 5, kind: input, shape index: {}]
  %s6 = inlined_call_operand.vmem [shape: f32[1,64], index: 6, kind: input, shape index: {}]
  %s7 = inlined_call_operand.vmem [shape: bf16[64,16], index: 7, kind: input, shape index: {}]
  %s8 = inlined_call_operand.vmem [shape: f32[1,16], index: 8, kind: input, shape index: {}]
  %s9 = inlined_call_operand.vmem [shape: bf16[16,20], index: 9, kind: input, shape index: {}]
  %s10 = inlined_call_operand.vmem [shape: f32[1,20], index: 10, kind: input, shape index: {}]
  %s11 = inlined_call_operand.vmem [shape: bf16[10,16], index: 11, kind: input, shape index: {}]
  %s12 = inlined_call_operand.vmem [shape: f32[1,16], index: 12, kind: input, shape index: {}]
  %s13 = inlined_call_operand.vmem [shape: bf16[16,64], index: 13, kind: input, shape index: {}]
  %s14 = inlined_call_operand.vmem [shape: f32[1,64], index: 14, kind: input, shape index: {}]
  %s15 = inlined_call_operand.vmem [shape: bf16[64,256], index: 15, kind: input, shape index: {}]
  %s16 = inlined_call_operand.vmem [shape: f32[1,256], index: 16, kind: input, shape index: {}]
  %s17 = inlined_call_operand.hbm [shape: bf16[256,512], index: 17, kind: input, shape index: {}]
  %s18 = inlined_call_operand.vmem [shape: f32[1,512], index: 18, kind: input, shape index: {}]
  %s19 = inlined_call_operand.vmem [shape: bf16[512,33], index: 19, kind: input, shape index: {}]
  %s20 = inlined_call_operand.vmem [shape: f32[1,33], index: 20, kind: input, shape index: {}]
  %s21 = inlined_call_operand.vmem [shape: f32[8,128], index: 21, kind: output, shape index: {}]
  %s22 = sld [smem:[#allocation0]]
  $region102: #{variational_forward.1} parent=0
    _
  %s24 = ssub.s32 1, %s22
  %s25 = scalar_select 0, %s24, %s22
  $region1: #{variational_forward.1} parent=0
    #allocation2 [shape = 'u8[262144]{0}', space=vmem, size = 0x40000, scoped, tag = 'input window, operand 3, single buffered']
    #allocation3 [shape = 's32[1]{0}', space=sflag, size = 0x4, scoped, tag = 'scoped memory for variational_forward.1']
    #allocation4 [shape = 'u8[262144]{0}', space=vmem, size = 0x40000, scoped, tag = 'input window, operand 17, single buffered']
    #allocation5 [shape = 's32[1]{0}', space=sflag, size = 0x4, scoped, tag = 'scoped memory for variational_forward.1']
    %26 = vsyncpa [#allocation3], 0
    %27 = vsyncpa [#allocation5], 0
    // Predicated region
    $region2: #{variational_forward.1} parent=1 // pred_check
      _
    $region3: #{variational_forward.1} parent=1 // pred_check_branch
      %29 = sbr.rel (0) target = $region5
    $region4: #{variational_forward.1} parent=1 // pred_region
      _
    $region5: #{variational_forward.1} parent=1 // pred_fallthru
      _
    // Predicated region
    $region6: #{variational_forward.1} parent=1 // pred_check
      _
    $region7: #{variational_forward.1} parent=1 // pred_check_branch
      %31 = sbr.rel (0) target = $region9
    $region8: #{variational_forward.1} parent=1 // pred_region
      _
    $region9: #{variational_forward.1} parent=1 // pred_fallthru
      _
    // Predicated region
    $region10: #{variational_forward.1} parent=1 // pred_check
      _
    $region11: #{variational_forward.1} parent=1 // pred_check_branch
      %33 = sbr.rel (0) target = $region13
    $region12: #{variational_forward.1} parent=1 // pred_region
      _
    $region13: #{variational_forward.1} parent=1 // pred_fallthru
      _
    // Predicated region
    $region14: #{variational_forward.1} parent=1 // pred_check
      _
    $region15: #{variational_forward.1} parent=1 // pred_check_branch
      %35 = sbr.rel (0) target = $region17
    $region16: #{variational_forward.1} parent=1 // pred_region
      %37 = vsyncadd [#allocation3], 0
      %s38 = sshll.u32 %s3, 4
      %s39 = int_to_ptr.hbm [resolvable:$true] %s38
      %s40 = sshll.u32 [#allocation2], 4
      %s41 = int_to_ptr.vmem [resolvable:$true] %s40
      %46 = dma.hbm_to_vmem [thread:$0]  %s39, 8192, %s41, [#allocation3], 128, 128, 8
    $region17: #{variational_forward.1} parent=1 // pred_fallthru
      _
    // Predicated region
    $region18: #{variational_forward.1} parent=1 // pred_check
      _
    $region19: #{variational_forward.1} parent=1 // pred_check_branch
      %48 = sbr.rel (0) target = $region21
    $region20: #{variational_forward.1} parent=1 // pred_region
      _
    $region21: #{variational_forward.1} parent=1 // pred_fallthru
      _
    // Predicated region
    $region22: #{variational_forward.1} parent=1 // pred_check
      _
    $region23: #{variational_forward.1} parent=1 // pred_check_branch
      %50 = sbr.rel (0) target = $region25
    $region24: #{variational_forward.1} parent=1 // pred_region
      _
    $region25: #{variational_forward.1} parent=1 // pred_fallthru
      _
    // Predicated region
    $region26: #{variational_forward.1} parent=1 // pred_check
      _
    $region27: #{variational_forward.1} parent=1 // pred_check_branch
      %52 = sbr.rel (0) target = $region29
    $region28: #{variational_forward.1} parent=1 // pred_region
      _
    $region29: #{variational_forward.1} parent=1 // pred_fallthru
      _
    // Predicated region
    $region30: #{variational_forward.1} parent=1 // pred_check
      _
    $region31: #{variational_forward.1} parent=1 // pred_check_branch
      %54 = sbr.rel (0) target = $region33
    $region32: #{variational_forward.1} parent=1 // pred_region
      _
    $region33: #{variational_forward.1} parent=1 // pred_fallthru
      _
    // Predicated region
    $region34: #{variational_forward.1} parent=1 // pred_check
      _
    $region35: #{variational_forward.1} parent=1 // pred_check_branch
      %56 = sbr.rel (0) target = $region37
    $region36: #{variational_forward.1} parent=1 // pred_region
      _
    $region37: #{variational_forward.1} parent=1 // pred_fallthru
      _
    // Predicated region
    $region38: #{variational_forward.1} parent=1 // pred_check
      _
    $region39: #{variational_forward.1} parent=1 // pred_check_branch
      %58 = sbr.rel (0) target = $region41
    $region40: #{variational_forward.1} parent=1 // pred_region
      _
    $region41: #{variational_forward.1} parent=1 // pred_fallthru
      _
    // Predicated region
    $region42: #{variational_forward.1} parent=1 // pred_check
      _
    $region43: #{variational_forward.1} parent=1 // pred_check_branch
      %60 = sbr.rel (0) target = $region45
    $region44: #{variational_forward.1} parent=1 // pred_region
      _
    $region45: #{variational_forward.1} parent=1 // pred_fallthru
      _
    // Predicated region
    $region46: #{variational_forward.1} parent=1 // pred_check
      _
    $region47: #{variational_forward.1} parent=1 // pred_check_branch
      %62 = sbr.rel (0) target = $region49
    $region48: #{variational_forward.1} parent=1 // pred_region
      _
    $region49: #{variational_forward.1} parent=1 // pred_fallthru
      _
    // Predicated region
    $region50: #{variational_forward.1} parent=1 // pred_check
      _
    $region51: #{variational_forward.1} parent=1 // pred_check_branch
      %64 = sbr.rel (0) target = $region53
    $region52: #{variational_forward.1} parent=1 // pred_region
      _
    $region53: #{variational_forward.1} parent=1 // pred_fallthru
      _
    // Predicated region
    $region54: #{variational_forward.1} parent=1 // pred_check
      _
    $region55: #{variational_forward.1} parent=1 // pred_check_branch
      %66 = sbr.rel (0) target = $region57
    $region56: #{variational_forward.1} parent=1 // pred_region
      _
    $region57: #{variational_forward.1} parent=1 // pred_fallthru
      _
    // Predicated region
    $region58: #{variational_forward.1} parent=1 // pred_check
      _
    $region59: #{variational_forward.1} parent=1 // pred_check_branch
      %68 = sbr.rel (0) target = $region61
    $region60: #{variational_forward.1} parent=1 // pred_region
      _
    $region61: #{variational_forward.1} parent=1 // pred_fallthru
      _
    // Predicated region
    $region62: #{variational_forward.1} parent=1 // pred_check
      _
    $region63: #{variational_forward.1} parent=1 // pred_check_branch
      %70 = sbr.rel (0) target = $region65
    $region64: #{variational_forward.1} parent=1 // pred_region
      _
    $region65: #{variational_forward.1} parent=1 // pred_fallthru
      _
    // Predicated region
    $region66: #{variational_forward.1} parent=1 // pred_check
      _
    $region67: #{variational_forward.1} parent=1 // pred_check_branch
      %72 = sbr.rel (0) target = $region69
    $region68: #{variational_forward.1} parent=1 // pred_region
      _
    $region69: #{variational_forward.1} parent=1 // pred_fallthru
      _
    // Predicated region
    $region70: #{variational_forward.1} parent=1 // pred_check
      _
    $region71: #{variational_forward.1} parent=1 // pred_check_branch
      %74 = sbr.rel (0) target = $region73
    $region72: #{variational_forward.1} parent=1 // pred_region
      %76 = vsyncadd [#allocation5], 0
      %s77 = sshll.u32 %s17, 4
      %s78 = int_to_ptr.hbm [resolvable:$true] %s77
      %s79 = sshll.u32 [#allocation4], 4
      %s80 = int_to_ptr.vmem [resolvable:$true] %s79
      %85 = dma.hbm_to_vmem [thread:$0]  %s78, 8192, %s80, [#allocation5], 256, 256, 16
    $region73: #{variational_forward.1} parent=1 // pred_fallthru
      _
    // Predicated region
    $region74: #{variational_forward.1} parent=1 // pred_check
      _
    $region75: #{variational_forward.1} parent=1 // pred_check_branch
      %87 = sbr.rel (0) target = $region77
    $region76: #{variational_forward.1} parent=1 // pred_region
      _
    $region77: #{variational_forward.1} parent=1 // pred_fallthru
      _
    // Predicated region
    $region78: #{variational_forward.1} parent=1 // pred_check
      _
    $region79: #{variational_forward.1} parent=1 // pred_check_branch
      %89 = sbr.rel (0) target = $region81
    $region80: #{variational_forward.1} parent=1 // pred_region
      _
    $region81: #{variational_forward.1} parent=1 // pred_fallthru
      _
    // Predicated region
    $region82: #{variational_forward.1} parent=1 // pred_check
      _
    $region83: #{variational_forward.1} parent=1 // pred_check_branch
      %91 = sbr.rel (0) target = $region85
    $region84: #{variational_forward.1} parent=1 // pred_region
      _
    $region85: #{variational_forward.1} parent=1 // pred_fallthru
      _
    // Predicated region
    $region86: #{variational_forward.1} parent=1 // pred_check
      _
    $region87: #{variational_forward.1} parent=1 // pred_check_branch
      %93 = sbr.rel (0) target = $region89
    $region88: #{variational_forward.1} parent=1 // pred_region
      %95 = dma.done [#allocation3], 8192
    $region89: #{variational_forward.1} parent=1 // pred_fallthru
      _
    // Predicated region
    $region90: #{variational_forward.1} parent=1 // pred_check
      _
    $region91: #{variational_forward.1} parent=1 // pred_check_branch
      %97 = sbr.rel (0) target = $region93
    $region92: #{variational_forward.1} parent=1 // pred_region
      %99 = dma.done [#allocation5], 8192
    $region93: #{variational_forward.1} parent=1 // pred_fallthru
      _
    %v101 = vld [vmem:[%s0] sm:$0xff]
    %v102 = vpack.c.bf16 %v101, %v101
    %v103 = vld [vmem:[%s1] sm:$0xff]
    %v104 = vld [vmem:[%s1 + $0x8] sm:$0xff]
    %v105 = vld [vmem:[%s1 + $0x10] sm:$0xff]
    %v106 = vld [vmem:[%s1 + $0x18] sm:$0xff]
    %v107 = vld [vmem:[%s1 + $0x20] sm:$0xff]
    %v108 = vld [vmem:[%s1 + $0x28] sm:$0xff]
    %v109 = vld [vmem:[%s1 + $0x30] sm:$0xff]
    %v110 = vld [vmem:[%s1 + $0x38] sm:$0xff]
    %v111 = vld [vmem:[%s1 + $0x40] sm:$0x11]
    %v112 = vld [vmem:[%s1 + $0x48] sm:$0x11]
    %v113 = vld [vmem:[%s2] sm:$0xf]
    %v115 = vperm.slane %v113, 0
    %v116 = vperm.slane %v113, 1
    %v117 = vperm.slane %v113, 2
    %v118 = vperm.slane %v113, 3
    %v133 = vunpack.c.l.b16 %v103
    %v134 = vunpack.c.h.b16 %v103
    %v135 = vunpack.c.l.b16 %v104
    %v136 = vunpack.c.h.b16 %v104
    %v137 = vunpack.c.l.b16 %v105
    %v138 = vunpack.c.h.b16 %v105
    %v139 = vunpack.c.l.b16 %v106
    %v140 = vunpack.c.h.b16 %v106
    %v141 = vunpack.c.l.b16 %v107
    %v142 = vunpack.c.h.b16 %v107
    %v143 = vunpack.c.l.b16 %v108
    %v144 = vunpack.c.h.b16 %v108
    %v145 = vunpack.c.l.b16 %v109
    %v146 = vunpack.c.h.b16 %v109
    %v147 = vunpack.c.l.b16 %v110
    %v148 = vunpack.c.h.b16 %v110
    %v149 = vunpack.c.l.b16 %v111
    %v150 = vunpack.c.h.b16 %v111
    %v151 = vunpack.c.l.b16 %v112
    %v152 = vunpack.c.h.b16 %v112
    %v153 = vpack.c.b16 %v137, %v133
    %v154 = vpack.c.b16 %v138, %v134
    %v155 = vpack.c.b16 %v139, %v135
    %v156 = vpack.c.b16 %v140, %v136
    %v157 = vpack.c.b16 %v145, %v141
    %v158 = vpack.c.b16 %v146, %v142
    %v159 = vpack.c.b16 %v147, %v143
    %v160 = vpack.c.b16 %v148, %v144
    %v161 = vpack.c.b16 %v149, %v149
    %v162 = vpack.c.b16 %v150, %v150
    %v163 = vpack.c.b16 %v151, %v151
    %v164 = vpack.c.b16 %v152, %v152
    %vm173 = vcmask 269312
    %v175 = vsel %vm173, %v102, 0
    %vm177 = vcmask 1040384
    %v178 = vsel 0, 4294967295, 65535
    %v179 = vsel %vm177, %v178, 0
    %v181 = vand.u32 %v161, %v179
    %v184 = vand.u32 %v162, %v179
    %v187 = vand.u32 %v163, %v179
    %v190 = vand.u32 %v164, %v179
    %192 = vmatpush.bf16.msra.mxu0 0
    %193 = vmatpush.bf16.msra.mxu0 0
    %194 = vmatpush.bf16.msra.mxu0 0
    %195 = vmatpush.bf16.msra.mxu0 0
    %196 = vmatpush.bf16.msra.mxu0 0
    %197 = vmatpush.bf16.msra.mxu0 %v181
    %198 = vmatpush.bf16.msra.mxu0 %v157
    %199 = vmatpush.bf16.msra.mxu0 %v153
    %200 = vmatmul.bf16.gmra.mxu0 %v175
    %v201 = vpop.f32.mrf.mxu0
    %v202 = vadd.f32 %v115, %v201
    %v203 = vpop.f32.mrf.mxu0
    %204 = vdwg.mxu0
    %205 = vmatpush.bf16.msra.mxu0 0
    %206 = vmatpush.bf16.msra.mxu0 0
    %207 = vmatpush.bf16.msra.mxu0 0
    %208 = vmatpush.bf16.msra.mxu0 0
    %209 = vmatpush.bf16.msra.mxu0 0
    %210 = vmatpush.bf16.msra.mxu0 %v184
    %211 = vmatpush.bf16.msra.mxu0 %v158
    %212 = vmatpush.bf16.msra.mxu0 %v154
    %213 = vmatmul.bf16.gmra.mxu0 %v175
    %v214 = vpop.f32.mrf.mxu0
    %v215 = vadd.f32 %v116, %v214
    %v216 = vpop.f32.mrf.mxu0
    %217 = vdwg.mxu0
    %218 = vmatpush.bf16.msra.mxu0 0
    %219 = vmatpush.bf16.msra.mxu0 0
    %220 = vmatpush.bf16.msra.mxu0 0
    %221 = vmatpush.bf16.msra.mxu0 0
    %222 = vmatpush.bf16.msra.mxu0 0
    %223 = vmatpush.bf16.msra.mxu0 %v187
    %224 = vmatpush.bf16.msra.mxu0 %v159
    %225 = vmatpush.bf16.msra.mxu0 %v155
    %226 = vmatmul.bf16.gmra.mxu0 %v175
    %v227 = vpop.f32.mrf.mxu0
    %v228 = vadd.f32 %v117, %v227
    %v229 = vpop.f32.mrf.mxu0
    %230 = vdwg.mxu0
    %231 = vmatpush.bf16.msra.mxu0 0
    %232 = vmatpush.bf16.msra.mxu0 0
    %233 = vmatpush.bf16.msra.mxu0 0
    %234 = vmatpush.bf16.msra.mxu0 0
    %235 = vmatpush.bf16.msra.mxu0 0
    %236 = vmatpush.bf16.msra.mxu0 %v190
    %237 = vmatpush.bf16.msra.mxu0 %v160
    %238 = vmatpush.bf16.msra.mxu0 %v156
    %239 = vmatmul.bf16.gmra.mxu0 %v175
    %v240 = vpop.f32.mrf.mxu0
    %v241 = vadd.f32 %v118, %v240
    %v242 = vpop.f32.mrf.mxu0
    %243 = vdwg.mxu0
    %v244 = vpack.c.bf16 %v215, %v202
    %v245 = vpack.c.bf16 %v241, %v228
    %v246 = vunpack.c.l.bf16 %v244
    %v247 = vunpack.c.h.bf16 %v244
    %v248 = vunpack.c.l.bf16 %v245
    %v249 = vunpack.c.h.bf16 %v245
    %v250 = vmax.f32 %v246, 0.0
    %v251 = vmax.f32 %v247, 0.0
    %v252 = vmax.f32 %v248, 0.0
    %v253 = vmax.f32 %v249, 0.0
    %v254 = vpack.c.bf16 %v250, %v250
    %v255 = vpack.c.bf16 %v251, %v251
    %v256 = vpack.c.bf16 %v252, %v252
    %v257 = vpack.c.bf16 %v253, %v253
    %v258 = vld [vmem:[#allocation2] sm:$0xff]
    %v259 = vld [vmem:[#allocation2 + $0x8] sm:$0xff]
    %v260 = vld [vmem:[#allocation2 + $0x10] sm:$0xff]
    %v261 = vld [vmem:[#allocation2 + $0x18] sm:$0xff]
    %v262 = vld [vmem:[#allocation2 + $0x20] sm:$0xff]
    %v263 = vld [vmem:[#allocation2 + $0x28] sm:$0xff]
    %v264 = vld [vmem:[#allocation2 + $0x30] sm:$0xff]
    %v265 = vld [vmem:[#allocation2 + $0x38] sm:$0xff]
    %v266 = vld [vmem:[#allocation2 + $0x40] sm:$0xff]
    %v267 = vld [vmem:[#allocation2 + $0x48] sm:$0xff]
    %v268 = vld [vmem:[#allocation2 + $0x50] sm:$0xff]
    %v269 = vld [vmem:[#allocation2 + $0x58] sm:$0xff]
    %v270 = vld [vmem:[#allocation2 + $0x60] sm:$0xff]
    %v271 = vld [vmem:[#allocation2 + $0x68] sm:$0xff]
    %v272 = vld [vmem:[#allocation2 + $0x70] sm:$0xff]
    %v273 = vld [vmem:[#allocation2 + $0x78] sm:$0xff]
    %v274 = vld [vmem:[#allocation2 + $0x80] sm:$0xff]
    %v275 = vld [vmem:[#allocation2 + $0x88] sm:$0xff]
    %v276 = vld [vmem:[#allocation2 + $0x90] sm:$0xff]
    %v277 = vld [vmem:[#allocation2 + $0x98] sm:$0xff]
    %v278 = vld [vmem:[#allocation2 + $0xa0] sm:$0xff]
    %v279 = vld [vmem:[#allocation2 + $0xa8] sm:$0xff]
    %v280 = vld [vmem:[#allocation2 + $0xb0] sm:$0xff]
    %v281 = vld [vmem:[#allocation2 + $0xb8] sm:$0xff]
    %v282 = vld [vmem:[#allocation2 + $0xc0] sm:$0xff]
    %v283 = vld [vmem:[#allocation2 + $0xc8] sm:$0xff]
    %v284 = vld [vmem:[#allocation2 + $0xd0] sm:$0xff]
    %v285 = vld [vmem:[#allocation2 + $0xd8] sm:$0xff]
    %v286 = vld [vmem:[#allocation2 + $0xe0] sm:$0xff]
    %v287 = vld [vmem:[#allocation2 + $0xe8] sm:$0xff]
    %v288 = vld [vmem:[#allocation2 + $0xf0] sm:$0xff]
    %v289 = vld [vmem:[#allocation2 + $0xf8] sm:$0xff]
    %v290 = vld [vmem:[#allocation2 + $0x100] sm:$0xff]
    %v291 = vld [vmem:[#allocation2 + $0x108] sm:$0xff]
    %v292 = vld [vmem:[#allocation2 + $0x110] sm:$0xff]
    %v293 = vld [vmem:[#allocation2 + $0x118] sm:$0xff]
    %v294 = vld [vmem:[#allocation2 + $0x120] sm:$0xff]
    %v295 = vld [vmem:[#allocation2 + $0x128] sm:$0xff]
    %v296 = vld [vmem:[#allocation2 + $0x130] sm:$0xff]
    %v297 = vld [vmem:[#allocation2 + $0x138] sm:$0xff]
    %v298 = vld [vmem:[#allocation2 + $0x140] sm:$0xff]
    %v299 = vld [vmem:[#allocation2 + $0x148] sm:$0xff]
    %v300 = vld [vmem:[#allocation2 + $0x150] sm:$0xff]
    %v301 = vld [vmem:[#allocation2 + $0x158] sm:$0xff]
    %v302 = vld [vmem:[#allocation2 + $0x160] sm:$0xff]
    %v303 = vld [vmem:[#allocation2 + $0x168] sm:$0xff]
    %v304 = vld [vmem:[#allocation2 + $0x170] sm:$0xff]
    %v305 = vld [vmem:[#allocation2 + $0x178] sm:$0xff]
    %v306 = vld [vmem:[#allocation2 + $0x180] sm:$0xff]
    %v307 = vld [vmem:[#allocation2 + $0x188] sm:$0xff]
    %v308 = vld [vmem:[#allocation2 + $0x190] sm:$0xff]
    %v309 = vld [vmem:[#allocation2 + $0x198] sm:$0xff]
    %v310 = vld [vmem:[#allocation2 + $0x1a0] sm:$0xff]
    %v311 = vld [vmem:[#allocation2 + $0x1a8] sm:$0xff]
    %v312 = vld [vmem:[#allocation2 + $0x1b0] sm:$0xff]
    %v313 = vld [vmem:[#allocation2 + $0x1b8] sm:$0xff]
    %v314 = vld [vmem:[#allocation2 + $0x1c0] sm:$0xff]
    %v315 = vld [vmem:[#allocation2 + $0x1c8] sm:$0xff]
    %v316 = vld [vmem:[#allocation2 + $0x1d0] sm:$0xff]
    %v317 = vld [vmem:[#allocation2 + $0x1d8] sm:$0xff]
    %v318 = vld [vmem:[#allocation2 + $0x1e0] sm:$0xff]
    %v319 = vld [vmem:[#allocation2 + $0x1e8] sm:$0xff]
    %v320 = vld [vmem:[#allocation2 + $0x1f0] sm:$0xff]
    %v321 = vld [vmem:[#allocation2 + $0x1f8] sm:$0xff]
    %v322 = vld [vmem:[%s4] sm:$0x3]
    %v324 = vperm.slane %v322, 0
    %v325 = vperm.slane %v322, 1
    %v392 = vunpack.c.l.b16 %v258
    %v393 = vunpack.c.h.b16 %v258
    %v394 = vunpack.c.l.b16 %v259
    %v395 = vunpack.c.h.b16 %v259
    %v396 = vunpack.c.l.b16 %v260
    %v397 = vunpack.c.h.b16 %v260
    %v398 = vunpack.c.l.b16 %v261
    %v399 = vunpack.c.h.b16 %v261
    %v400 = vunpack.c.l.b16 %v262
    %v401 = vunpack.c.h.b16 %v262
    %v402 = vunpack.c.l.b16 %v263
    %v403 = vunpack.c.h.b16 %v263
    %v404 = vunpack.c.l.b16 %v264
    %v405 = vunpack.c.h.b16 %v264
    %v406 = vunpack.c.l.b16 %v265
    %v407 = vunpack.c.h.b16 %v265
    %v408 = vunpack.c.l.b16 %v266
    %v409 = vunpack.c.h.b16 %v266
    %v410 = vunpack.c.l.b16 %v267
    %v411 = vunpack.c.h.b16 %v267
    %v412 = vunpack.c.l.b16 %v268
    %v413 = vunpack.c.h.b16 %v268
    %v414 = vunpack.c.l.b16 %v269
    %v415 = vunpack.c.h.b16 %v269
    %v416 = vunpack.c.l.b16 %v270
    %v417 = vunpack.c.h.b16 %v270
    %v418 = vunpack.c.l.b16 %v271
    %v419 = vunpack.c.h.b16 %v271
    %v420 = vunpack.c.l.b16 %v272
    %v421 = vunpack.c.h.b16 %v272
    %v422 = vunpack.c.l.b16 %v273
    %v423 = vunpack.c.h.b16 %v273
    %v424 = vunpack.c.l.b16 %v274
    %v425 = vunpack.c.h.b16 %v274
    %v426 = vunpack.c.l.b16 %v275
    %v427 = vunpack.c.h.b16 %v275
    %v428 = vunpack.c.l.b16 %v276
    %v429 = vunpack.c.h.b16 %v276
    %v430 = vunpack.c.l.b16 %v277
    %v431 = vunpack.c.h.b16 %v277
    %v432 = vunpack.c.l.b16 %v278
    %v433 = vunpack.c.h.b16 %v278
    %v434 = vunpack.c.l.b16 %v279
    %v435 = vunpack.c.h.b16 %v279
    %v436 = vunpack.c.l.b16 %v280
    %v437 = vunpack.c.h.b16 %v280
    %v438 = vunpack.c.l.b16 %v281
    %v439 = vunpack.c.h.b16 %v281
    %v440 = vunpack.c.l.b16 %v282
    %v441 = vunpack.c.h.b16 %v282
    %v442 = vunpack.c.l.b16 %v283
    %v443 = vunpack.c.h.b16 %v283
    %v444 = vunpack.c.l.b16 %v284
    %v445 = vunpack.c.h.b16 %v284
    %v446 = vunpack.c.l.b16 %v285
    %v447 = vunpack.c.h.b16 %v285
    %v448 = vunpack.c.l.b16 %v286
    %v449 = vunpack.c.h.b16 %v286
    %v450 = vunpack.c.l.b16 %v287
    %v451 = vunpack.c.h.b16 %v287
    %v452 = vunpack.c.l.b16 %v288
    %v453 = vunpack.c.h.b16 %v288
    %v454 = vunpack.c.l.b16 %v289
    %v455 = vunpack.c.h.b16 %v289
    %v456 = vunpack.c.l.b16 %v290
    %v457 = vunpack.c.h.b16 %v290
    %v458 = vunpack.c.l.b16 %v291
    %v459 = vunpack.c.h.b16 %v291
    %v460 = vunpack.c.l.b16 %v292
    %v461 = vunpack.c.h.b16 %v292
    %v462 = vunpack.c.l.b16 %v293
    %v463 = vunpack.c.h.b16 %v293
    %v464 = vunpack.c.l.b16 %v294
    %v465 = vunpack.c.h.b16 %v294
    %v466 = vunpack.c.l.b16 %v295
    %v467 = vunpack.c.h.b16 %v295
    %v468 = vunpack.c.l.b16 %v296
    %v469 = vunpack.c.h.b16 %v296
    %v470 = vunpack.c.l.b16 %v297
    %v471 = vunpack.c.h.b16 %v297
    %v472 = vunpack.c.l.b16 %v298
    %v473 = vunpack.c.h.b16 %v298
    %v474 = vunpack.c.l.b16 %v299
    %v475 = vunpack.c.h.b16 %v299
    %v476 = vunpack.c.l.b16 %v300
    %v477 = vunpack.c.h.b16 %v300
    %v478 = vunpack.c.l.b16 %v301
    %v479 = vunpack.c.h.b16 %v301
    %v480 = vunpack.c.l.b16 %v302
    %v481 = vunpack.c.h.b16 %v302
    %v482 = vunpack.c.l.b16 %v303
    %v483 = vunpack.c.h.b16 %v303
    %v484 = vunpack.c.l.b16 %v304
    %v485 = vunpack.c.h.b16 %v304
    %v486 = vunpack.c.l.b16 %v305
    %v487 = vunpack.c.h.b16 %v305
    %v488 = vunpack.c.l.b16 %v306
    %v489 = vunpack.c.h.b16 %v306
    %v490 = vunpack.c.l.b16 %v307
    %v491 = vunpack.c.h.b16 %v307
    %v492 = vunpack.c.l.b16 %v308
    %v493 = vunpack.c.h.b16 %v308
    %v494 = vunpack.c.l.b16 %v309
    %v495 = vunpack.c.h.b16 %v309
    %v496 = vunpack.c.l.b16 %v310
    %v497 = vunpack.c.h.b16 %v310
    %v498 = vunpack.c.l.b16 %v311
    %v499 = vunpack.c.h.b16 %v311
    %v500 = vunpack.c.l.b16 %v312
    %v501 = vunpack.c.h.b16 %v312
    %v502 = vunpack.c.l.b16 %v313
    %v503 = vunpack.c.h.b16 %v313
    %v504 = vunpack.c.l.b16 %v314
    %v505 = vunpack.c.h.b16 %v314
    %v506 = vunpack.c.l.b16 %v315
    %v507 = vunpack.c.h.b16 %v315
    %v508 = vunpack.c.l.b16 %v316
    %v509 = vunpack.c.h.b16 %v316
    %v510 = vunpack.c.l.b16 %v317
    %v511 = vunpack.c.h.b16 %v317
    %v512 = vunpack.c.l.b16 %v318
    %v513 = vunpack.c.h.b16 %v318
    %v514 = vunpack.c.l.b16 %v319
    %v515 = vunpack.c.h.b16 %v319
    %v516 = vunpack.c.l.b16 %v320
    %v517 = vunpack.c.h.b16 %v320
    %v518 = vunpack.c.l.b16 %v321
    %v519 = vunpack.c.h.b16 %v321
    %v520 = vpack.c.b16 %v394, %v392
    %v521 = vpack.c.b16 %v395, %v393
    %v522 = vpack.c.b16 %v398, %v396
    %v523 = vpack.c.b16 %v399, %v397
    %v524 = vpack.c.b16 %v402, %v400
    %v525 = vpack.c.b16 %v403, %v401
    %v526 = vpack.c.b16 %v406, %v404
    %v527 = vpack.c.b16 %v407, %v405
    %v528 = vpack.c.b16 %v410, %v408
    %v529 = vpack.c.b16 %v411, %v409
    %v530 = vpack.c.b16 %v414, %v412
    %v531 = vpack.c.b16 %v415, %v413
    %v532 = vpack.c.b16 %v418, %v416
    %v533 = vpack.c.b16 %v419, %v417
    %v534 = vpack.c.b16 %v422, %v420
    %v535 = vpack.c.b16 %v423, %v421
    %v536 = vpack.c.b16 %v426, %v424
    %v537 = vpack.c.b16 %v427, %v425
    %v538 = vpack.c.b16 %v430, %v428
    %v539 = vpack.c.b16 %v431, %v429
    %v540 = vpack.c.b16 %v434, %v432
    %v541 = vpack.c.b16 %v435, %v433
    %v542 = vpack.c.b16 %v438, %v436
    %v543 = vpack.c.b16 %v439, %v437
    %v544 = vpack.c.b16 %v442, %v440
    %v545 = vpack.c.b16 %v443, %v441
    %v546 = vpack.c.b16 %v446, %v444
    %v547 = vpack.c.b16 %v447, %v445
    %v548 = vpack.c.b16 %v450, %v448
    %v549 = vpack.c.b16 %v451, %v449
    %v550 = vpack.c.b16 %v454, %v452
    %v551 = vpack.c.b16 %v455, %v453
    %v552 = vpack.c.b16 %v458, %v456
    %v553 = vpack.c.b16 %v459, %v457
    %v554 = vpack.c.b16 %v462, %v460
    %v555 = vpack.c.b16 %v463, %v461
    %v556 = vpack.c.b16 %v466, %v464
    %v557 = vpack.c.b16 %v467, %v465
    %v558 = vpack.c.b16 %v470, %v468
    %v559 = vpack.c.b16 %v471, %v469
    %v560 = vpack.c.b16 %v474, %v472
    %v561 = vpack.c.b16 %v475, %v473
    %v562 = vpack.c.b16 %v478, %v476
    %v563 = vpack.c.b16 %v479, %v477
    %v564 = vpack.c.b16 %v482, %v480
    %v565 = vpack.c.b16 %v483, %v481
    %v566 = vpack.c.b16 %v486, %v484
    %v567 = vpack.c.b16 %v487, %v485
    %v568 = vpack.c.b16 %v490, %v488
    %v569 = vpack.c.b16 %v491, %v489
    %v570 = vpack.c.b16 %v494, %v492
    %v571 = vpack.c.b16 %v495, %v493
    %v572 = vpack.c.b16 %v498, %v496
    %v573 = vpack.c.b16 %v499, %v497
    %v574 = vpack.c.b16 %v502, %v500
    %v575 = vpack.c.b16 %v503, %v501
    %v576 = vpack.c.b16 %v506, %v504
    %v577 = vpack.c.b16 %v507, %v505
    %v578 = vpack.c.b16 %v510, %v508
    %v579 = vpack.c.b16 %v511, %v509
    %v580 = vpack.c.b16 %v514, %v512
    %v581 = vpack.c.b16 %v515, %v513
    %v582 = vpack.c.b16 %v518, %v516
    %v583 = vpack.c.b16 %v519, %v517
    %648 = vmatpush.bf16.msra.mxu0 %v534
    %649 = vmatpush.bf16.msra.mxu0 %v532
    %650 = vmatpush.bf16.msra.mxu0 %v530
    %651 = vmatpush.bf16.msra.mxu0 %v528
    %652 = vmatpush.bf16.msra.mxu0 %v526
    %653 = vmatpush.bf16.msra.mxu0 %v524
    %654 = vmatpush.bf16.msra.mxu0 %v522
    %655 = vmatpush.bf16.msra.mxu0 %v520
    %656 = vmatmul.bf16.gmra.mxu0 %v254
    %v657 = vpop.f32.mrf.mxu0
    %v658 = vadd.f32 %v324, %v657
    %v659 = vpop.f32.mrf.mxu0
    %660 = vdwg.mxu0
    %661 = vmatpush.bf16.msra.mxu0 %v550
    %662 = vmatpush.bf16.msra.mxu0 %v548
    %663 = vmatpush.bf16.msra.mxu0 %v546
    %664 = vmatpush.bf16.msra.mxu0 %v544
    %665 = vmatpush.bf16.msra.mxu0 %v542
    %666 = vmatpush.bf16.msra.mxu0 %v540
    %667 = vmatpush.bf16.msra.mxu0 %v538
    %668 = vmatpush.bf16.msra.mxu0 %v536
    %669 = vmatmul.bf16.gmra.mxu0 %v255
    %v670 = vpop.f32.mrf.mxu0
    %v671 = vadd.f32 %v658, %v670
    %v672 = vpop.f32.mrf.mxu0
    %673 = vdwg.mxu0
    %674 = vmatpush.bf16.msra.mxu0 %v566
    %675 = vmatpush.bf16.msra.mxu0 %v564
    %676 = vmatpush.bf16.msra.mxu0 %v562
    %677 = vmatpush.bf16.msra.mxu0 %v560
    %678 = vmatpush.bf16.msra.mxu0 %v558
    %679 = vmatpush.bf16.msra.mxu0 %v556
    %680 = vmatpush.bf16.msra.mxu0 %v554
    %681 = vmatpush.bf16.msra.mxu0 %v552
    %682 = vmatmul.bf16.gmra.mxu0 %v256
    %v683 = vpop.f32.mrf.mxu0
    %v684 = vadd.f32 %v671, %v683
    %v685 = vpop.f32.mrf.mxu0
    %686 = vdwg.mxu0
    %687 = vmatpush.bf16.msra.mxu0 %v582
    %688 = vmatpush.bf16.msra.mxu0 %v580
    %689 = vmatpush.bf16.msra.mxu0 %v578
    %690 = vmatpush.bf16.msra.mxu0 %v576
    %691 = vmatpush.bf16.msra.mxu0 %v574
    %692 = vmatpush.bf16.msra.mxu0 %v572
    %693 = vmatpush.bf16.msra.mxu0 %v570
    %694 = vmatpush.bf16.msra.mxu0 %v568
    %695 = vmatmul.bf16.gmra.mxu0 %v257
    %v696 = vpop.f32.mrf.mxu0
    %v697 = vadd.f32 %v684, %v696
    %v698 = vpop.f32.mrf.mxu0
    %699 = vdwg.mxu0
    %700 = vmatpush.bf16.msra.mxu0 %v535
    %701 = vmatpush.bf16.msra.mxu0 %v533
    %702 = vmatpush.bf16.msra.mxu0 %v531
    %703 = vmatpush.bf16.msra.mxu0 %v529
    %704 = vmatpush.bf16.msra.mxu0 %v527
    %705 = vmatpush.bf16.msra.mxu0 %v525
    %706 = vmatpush.bf16.msra.mxu0 %v523
    %707 = vmatpush.bf16.msra.mxu0 %v521
    %708 = vmatmul.bf16.gmra.mxu0 %v254
    %v709 = vpop.f32.mrf.mxu0
    %v710 = vadd.f32 %v325, %v709
    %v711 = vpop.f32.mrf.mxu0
    %712 = vdwg.mxu0
    %713 = vmatpush.bf16.msra.mxu0 %v551
    %714 = vmatpush.bf16.msra.mxu0 %v549
    %715 = vmatpush.bf16.msra.mxu0 %v547
    %716 = vmatpush.bf16.msra.mxu0 %v545
    %717 = vmatpush.bf16.msra.mxu0 %v543
    %718 = vmatpush.bf16.msra.mxu0 %v541
    %719 = vmatpush.bf16.msra.mxu0 %v539
    %720 = vmatpush.bf16.msra.mxu0 %v537
    %721 = vmatmul.bf16.gmra.mxu0 %v255
    %v722 = vpop.f32.mrf.mxu0
    %v723 = vadd.f32 %v710, %v722
    %v724 = vpop.f32.mrf.mxu0
    %725 = vdwg.mxu0
    %726 = vmatpush.bf16.msra.mxu0 %v567
    %727 = vmatpush.bf16.msra.mxu0 %v565
    %728 = vmatpush.bf16.msra.mxu0 %v563
    %729 = vmatpush.bf16.msra.mxu0 %v561
    %730 = vmatpush.bf16.msra.mxu0 %v559
    %731 = vmatpush.bf16.msra.mxu0 %v557
    %732 = vmatpush.bf16.msra.mxu0 %v555
    %733 = vmatpush.bf16.msra.mxu0 %v553
    %734 = vmatmul.bf16.gmra.mxu0 %v256
    %v735 = vpop.f32.mrf.mxu0
    %v736 = vadd.f32 %v723, %v735
    %v737 = vpop.f32.mrf.mxu0
    %738 = vdwg.mxu0
    %739 = vmatpush.bf16.msra.mxu0 %v583
    %740 = vmatpush.bf16.msra.mxu0 %v581
    %741 = vmatpush.bf16.msra.mxu0 %v579
    %742 = vmatpush.bf16.msra.mxu0 %v577
    %743 = vmatpush.bf16.msra.mxu0 %v575
    %744 = vmatpush.bf16.msra.mxu0 %v573
    %745 = vmatpush.bf16.msra.mxu0 %v571
    %746 = vmatpush.bf16.msra.mxu0 %v569
    %747 = vmatmul.bf16.gmra.mxu0 %v257
    %v748 = vpop.f32.mrf.mxu0
    %v749 = vadd.f32 %v736, %v748
    %v750 = vpop.f32.mrf.mxu0
    %751 = vdwg.mxu0
    %v752 = vpack.c.bf16 %v749, %v697
    %v753 = vunpack.c.l.bf16 %v752
    %v754 = vunpack.c.h.bf16 %v752
    %v755 = vmax.f32 %v753, 0.0
    %v756 = vmax.f32 %v754, 0.0
    %v757 = vpack.c.bf16 %v755, %v755
    %v758 = vpack.c.bf16 %v756, %v756
    %v759 = vld [vmem:[%s5] sm:$0xf]
    %v760 = vld [vmem:[%s5 + $0x4] sm:$0xf]
    %v761 = vld [vmem:[%s5 + $0x8] sm:$0xf]
    %v762 = vld [vmem:[%s5 + $0xc] sm:$0xf]
    %v763 = vld [vmem:[%s5 + $0x10] sm:$0xf]
    %v764 = vld [vmem:[%s5 + $0x14] sm:$0xf]
    %v765 = vld [vmem:[%s5 + $0x18] sm:$0xf]
    %v766 = vld [vmem:[%s5 + $0x1c] sm:$0xf]
    %v767 = vld [vmem:[%s5 + $0x20] sm:$0xf]
    %v768 = vld [vmem:[%s5 + $0x24] sm:$0xf]
    %v769 = vld [vmem:[%s5 + $0x28] sm:$0xf]
    %v770 = vld [vmem:[%s5 + $0x2c] sm:$0xf]
    %v771 = vld [vmem:[%s5 + $0x30] sm:$0xf]
    %v772 = vld [vmem:[%s5 + $0x34] sm:$0xf]
    %v773 = vld [vmem:[%s5 + $0x38] sm:$0xf]
    %v774 = vld [vmem:[%s5 + $0x3c] sm:$0xf]
    %v775 = vld [vmem:[%s5 + $0x40] sm:$0xf]
    %v776 = vld [vmem:[%s5 + $0x44] sm:$0xf]
    %v777 = vld [vmem:[%s5 + $0x48] sm:$0xf]
    %v778 = vld [vmem:[%s5 + $0x4c] sm:$0xf]
    %v779 = vld [vmem:[%s5 + $0x50] sm:$0xf]
    %v780 = vld [vmem:[%s5 + $0x54] sm:$0xf]
    %v781 = vld [vmem:[%s5 + $0x58] sm:$0xf]
    %v782 = vld [vmem:[%s5 + $0x5c] sm:$0xf]
    %v783 = vld [vmem:[%s5 + $0x60] sm:$0xf]
    %v784 = vld [vmem:[%s5 + $0x64] sm:$0xf]
    %v785 = vld [vmem:[%s5 + $0x68] sm:$0xf]
    %v786 = vld [vmem:[%s5 + $0x6c] sm:$0xf]
    %v787 = vld [vmem:[%s5 + $0x70] sm:$0xf]
    %v788 = vld [vmem:[%s5 + $0x74] sm:$0xf]
    %v789 = vld [vmem:[%s5 + $0x78] sm:$0xf]
    %v790 = vld [vmem:[%s5 + $0x7c] sm:$0xf]
    %v791 = vld [vmem:[%s6] sm:$0x1]
    %v793 = vperm.slane %v791, 0
    %v827 = vunpack.c.l.b16 %v759
    %v828 = vunpack.c.l.b16 %v760
    %v829 = vunpack.c.l.b16 %v761
    %v830 = vunpack.c.l.b16 %v762
    %v831 = vunpack.c.l.b16 %v763
    %v832 = vunpack.c.l.b16 %v764
    %v833 = vunpack.c.l.b16 %v765
    %v834 = vunpack.c.l.b16 %v766
    %v835 = vunpack.c.l.b16 %v767
    %v836 = vunpack.c.l.b16 %v768
    %v837 = vunpack.c.l.b16 %v769
    %v838 = vunpack.c.l.b16 %v770
    %v839 = vunpack.c.l.b16 %v771
    %v840 = vunpack.c.l.b16 %v772
    %v841 = vunpack.c.l.b16 %v773
    %v842 = vunpack.c.l.b16 %v774
    %v843 = vunpack.c.l.b16 %v775
    %v844 = vunpack.c.l.b16 %v776
    %v845 = vunpack.c.l.b16 %v777
    %v846 = vunpack.c.l.b16 %v778
    %v847 = vunpack.c.l.b16 %v779
    %v848 = vunpack.c.l.b16 %v780
    %v849 = vunpack.c.l.b16 %v781
    %v850 = vunpack.c.l.b16 %v782
    %v851 = vunpack.c.l.b16 %v783
    %v852 = vunpack.c.l.b16 %v784
    %v853 = vunpack.c.l.b16 %v785
    %v854 = vunpack.c.l.b16 %v786
    %v855 = vunpack.c.l.b16 %v787
    %v856 = vunpack.c.l.b16 %v788
    %v857 = vunpack.c.l.b16 %v789
    %v858 = vunpack.c.l.b16 %v790
    %v859 = vpack.c.b16 %v828, %v827
    %v860 = vpack.c.b16 %v830, %v829
    %v861 = vpack.c.b16 %v832, %v831
    %v862 = vpack.c.b16 %v834, %v833
    %v863 = vpack.c.b16 %v836, %v835
    %v864 = vpack.c.b16 %v838, %v837
    %v865 = vpack.c.b16 %v840, %v839
    %v866 = vpack.c.b16 %v842, %v841
    %v867 = vpack.c.b16 %v844, %v843
    %v868 = vpack.c.b16 %v846, %v845
    %v869 = vpack.c.b16 %v848, %v847
    %v870 = vpack.c.b16 %v850, %v849
    %v871 = vpack.c.b16 %v852, %v851
    %v872 = vpack.c.b16 %v854, %v853
    %v873 = vpack.c.b16 %v856, %v855
    %v874 = vpack.c.b16 %v858, %v857
    %891 = vmatpush.bf16.msra.mxu0 %v866
    %892 = vmatpush.bf16.msra.mxu0 %v865
    %893 = vmatpush.bf16.msra.mxu0 %v864
    %894 = vmatpush.bf16.msra.mxu0 %v863
    %895 = vmatpush.bf16.msra.mxu0 %v862
    %896 = vmatpush.bf16.msra.mxu0 %v861
    %897 = vmatpush.bf16.msra.mxu0 %v860
    %898 = vmatpush.bf16.msra.mxu0 %v859
    %899 = vmatmul.bf16.gmra.mxu0 %v757
    %v900 = vpop.f32.mrf.mxu0
    %v901 = vadd.f32 %v793, %v900
    %v902 = vpop.f32.mrf.mxu0
    %903 = vdwg.mxu0
    %904 = vmatpush.bf16.msra.mxu0 %v874
    %905 = vmatpush.bf16.msra.mxu0 %v873
    %906 = vmatpush.bf16.msra.mxu0 %v872
    %907 = vmatpush.bf16.msra.mxu0 %v871
    %908 = vmatpush.bf16.msra.mxu0 %v870
    %909 = vmatpush.bf16.msra.mxu0 %v869
    %910 = vmatpush.bf16.msra.mxu0 %v868
    %911 = vmatpush.bf16.msra.mxu0 %v867
    %912 = vmatmul.bf16.gmra.mxu0 %v758
    %v913 = vpop.f32.mrf.mxu0
    %v914 = vadd.f32 %v901, %v913
    %v915 = vpop.f32.mrf.mxu0
    %916 = vdwg.mxu0
    %v917 = vpack.c.bf16 %v914, %v914
    %v918 = vunpack.c.l.bf16 %v917
    %v919 = vmax.f32 %v918, 0.0
    %v920 = vpack.c.bf16 %v919, %v919
    %v921 = vld [vmem:[%s7] sm:$0xf]
    %v922 = vld [vmem:[%s7 + $0x4] sm:$0xf]
    %v923 = vld [vmem:[%s7 + $0x8] sm:$0xf]
    %v924 = vld [vmem:[%s7 + $0xc] sm:$0xf]
    %v925 = vld [vmem:[%s7 + $0x10] sm:$0xf]
    %v926 = vld [vmem:[%s7 + $0x14] sm:$0xf]
    %v927 = vld [vmem:[%s7 + $0x18] sm:$0xf]
    %v928 = vld [vmem:[%s7 + $0x1c] sm:$0xf]
    %v929 = vld [vmem:[%s8] sm:$0x1]
    %v931 = vperm.slane %v929, 0
    %v941 = vunpack.c.l.b16 %v921
    %v942 = vunpack.c.l.b16 %v922
    %v943 = vunpack.c.l.b16 %v923
    %v944 = vunpack.c.l.b16 %v924
    %v945 = vunpack.c.l.b16 %v925
    %v946 = vunpack.c.l.b16 %v926
    %v947 = vunpack.c.l.b16 %v927
    %v948 = vunpack.c.l.b16 %v928
    %v949 = vpack.c.b16 %v942, %v941
    %v950 = vpack.c.b16 %v944, %v943
    %v951 = vpack.c.b16 %v946, %v945
    %v952 = vpack.c.b16 %v948, %v947
    %vm957 = vcmask 523264
    %v959 = vsel %vm957, %v920, 0
    %961 = vmatpush.bf16.msra.mxu0 0
    %962 = vmatpush.bf16.msra.mxu0 0
    %963 = vmatpush.bf16.msra.mxu0 0
    %964 = vmatpush.bf16.msra.mxu0 0
    %965 = vmatpush.bf16.msra.mxu0 %v952
    %966 = vmatpush.bf16.msra.mxu0 %v951
    %967 = vmatpush.bf16.msra.mxu0 %v950
    %968 = vmatpush.bf16.msra.mxu0 %v949
    %969 = vmatmul.bf16.gmra.mxu0 %v959
    %v970 = vpop.f32.mrf.mxu0
    %v971 = vadd.f32 %v931, %v970
    %v972 = vpop.f32.mrf.mxu0
    %973 = vdwg.mxu0
    %v974 = vpack.c.bf16 %v971, %v971
    %v975 = vunpack.c.l.bf16 %v974
    %v976 = vmax.f32 %v975, 0.0
    %v977 = vpack.c.bf16 %v976, %v976
    %v978 = vld [vmem:[%s9] sm:$0xf]
    %v979 = vld [vmem:[%s9 + $0x4] sm:$0xf]
    %v980 = vld [vmem:[%s10] sm:$0x1]
    %v982 = vperm.slane %v980, 0
    %v986 = vunpack.c.l.b16 %v978
    %v987 = vunpack.c.l.b16 %v979
    %v988 = vpack.c.b16 %v987, %v986
    %vm990 = vcmask 130048
    %v992 = vsel %vm990, %v977, 0
    %994 = vmatpush.bf16.msra.mxu0 0
    %995 = vmatpush.bf16.msra.mxu0 0
    %996 = vmatpush.bf16.msra.mxu0 0
    %997 = vmatpush.bf16.msra.mxu0 0
    %998 = vmatpush.bf16.msra.mxu0 0
    %999 = vmatpush.bf16.msra.mxu0 0
    %1000 = vmatpush.bf16.msra.mxu0 0
    %1001 = vmatpush.bf16.msra.mxu0 %v988
    %1002 = vmatmul.bf16.gmra.mxu0 %v992
    %v1003 = vpop.f32.mrf.mxu0
    %v1004 = vadd.f32 %v982, %v1003
    %v1005 = vpop.f32.mrf.mxu0
    %1006 = vdwg.mxu0
    %v1007 = vmul.f32 %v1004, 0.5
    %v1008 = vmul.f32 %v1007, 1.442695
    %v1009 = vpow.pop %v1008
    %1011 = vrot.lane.b32.xlu0 %v101, 105
    %v1012 = vpop.permute.xlu0 %1011
    %v1014 = vmul.f32 %v1009, %v1012
    %1016 = vrot.lane.b32.xlu0 %v1014, 118
    %v1017 = vpop.permute.xlu0 %1016
    %v1019 = vadd.f32 %v1004, %v1017
    %v1020 = vpack.c.bf16 %v1019, %v1019
    %v1021 = vld [vmem:[%s11] sm:$0xf]
    %v1022 = vld [vmem:[%s11 + $0x4] sm:$0x1]
    %v1023 = vld [vmem:[%s12] sm:$0x1]
    %v1025 = vperm.slane %v1023, 0
    %v1029 = vunpack.c.l.b16 %v1021
    %v1030 = vunpack.c.l.b16 %v1022
    %v1031 = vpack.c.b16 %v1030, %v1029
    %vm1032 = vcmask 80896
    %v1034 = vsel %vm1032, %v1020, 0
    %vm1036 = vcmask 1044480
    %v1038 = vsel %vm1036, %v1031, 0
    %1040 = vmatpush.bf16.msra.mxu0 0
    %1041 = vmatpush.bf16.msra.mxu0 0
    %1042 = vmatpush.bf16.msra.mxu0 0
    %1043 = vmatpush.bf16.msra.mxu0 0
    %1044 = vmatpush.bf16.msra.mxu0 0
    %1045 = vmatpush.bf16.msra.mxu0 0
    %1046 = vmatpush.bf16.msra.mxu0 0
    %1047 = vmatpush.bf16.msra.mxu0 %v1038
    %1048 = vmatmul.bf16.gmra.mxu0 %v1034
    %v1049 = vpop.f32.mrf.mxu0
    %v1050 = vadd.f32 %v1025, %v1049
    %v1051 = vpop.f32.mrf.mxu0
    %1052 = vdwg.mxu0
    %v1053 = vpack.c.bf16 %v1050, %v1050
    %v1054 = vunpack.c.l.bf16 %v1053
    %v1055 = vmax.f32 %v1054, 0.0
    %v1056 = vpack.c.bf16 %v1055, %v1055
    %v1057 = vld [vmem:[%s13] sm:$0xf]
    %v1058 = vld [vmem:[%s13 + $0x4] sm:$0xf]
    %v1059 = vld [vmem:[%s14] sm:$0x1]
    %v1061 = vperm.slane %v1059, 0
    %v1065 = vunpack.c.l.b16 %v1057
    %v1066 = vunpack.c.l.b16 %v1058
    %v1067 = vpack.c.b16 %v1066, %v1065
    %v1070 = vsel %vm990, %v1056, 0
    %1072 = vmatpush.bf16.msra.mxu0 0
    %1073 = vmatpush.bf16.msra.mxu0 0
    %1074 = vmatpush.bf16.msra.mxu0 0
    %1075 = vmatpush.bf16.msra.mxu0 0
    %1076 = vmatpush.bf16.msra.mxu0 0
    %1077 = vmatpush.bf16.msra.mxu0 0
    %1078 = vmatpush.bf16.msra.mxu0 0
    %1079 = vmatpush.bf16.msra.mxu0 %v1067
    %1080 = vmatmul.bf16.gmra.mxu0 %v1070
    %v1081 = vpop.f32.mrf.mxu0
    %v1082 = vadd.f32 %v1061, %v1081
    %v1083 = vpop.f32.mrf.mxu0
    %1084 = vdwg.mxu0
    %v1085 = vpack.c.bf16 %v1082, %v1082
    %v1086 = vunpack.c.l.bf16 %v1085
    %v1087 = vmax.f32 %v1086, 0.0
    %v1088 = vpack.c.bf16 %v1087, %v1087
    %v1089 = vld [vmem:[%s15] sm:$0xff]
    %v1090 = vld [vmem:[%s15 + $0x8] sm:$0xff]
    %v1091 = vld [vmem:[%s15 + $0x10] sm:$0xff]
    %v1092 = vld [vmem:[%s15 + $0x18] sm:$0xff]
    %v1093 = vld [vmem:[%s15 + $0x20] sm:$0xff]
    %v1094 = vld [vmem:[%s15 + $0x28] sm:$0xff]
    %v1095 = vld [vmem:[%s15 + $0x30] sm:$0xff]
    %v1096 = vld [vmem:[%s15 + $0x38] sm:$0xff]
    %v1097 = vld [vmem:[%s16] sm:$0x3]
    %v1099 = vperm.slane %v1097, 0
    %v1100 = vperm.slane %v1097, 1
    %v1111 = vunpack.c.l.b16 %v1089
    %v1112 = vunpack.c.h.b16 %v1089
    %v1113 = vunpack.c.l.b16 %v1090
    %v1114 = vunpack.c.h.b16 %v1090
    %v1115 = vunpack.c.l.b16 %v1091
    %v1116 = vunpack.c.h.b16 %v1091
    %v1117 = vunpack.c.l.b16 %v1092
    %v1118 = vunpack.c.h.b16 %v1092
    %v1119 = vunpack.c.l.b16 %v1093
    %v1120 = vunpack.c.h.b16 %v1093
    %v1121 = vunpack.c.l.b16 %v1094
    %v1122 = vunpack.c.h.b16 %v1094
    %v1123 = vunpack.c.l.b16 %v1095
    %v1124 = vunpack.c.h.b16 %v1095
    %v1125 = vunpack.c.l.b16 %v1096
    %v1126 = vunpack.c.h.b16 %v1096
    %v1127 = vpack.c.b16 %v1113, %v1111
    %v1128 = vpack.c.b16 %v1114, %v1112
    %v1129 = vpack.c.b16 %v1117, %v1115
    %v1130 = vpack.c.b16 %v1118, %v1116
    %v1131 = vpack.c.b16 %v1121, %v1119
    %v1132 = vpack.c.b16 %v1122, %v1120
    %v1133 = vpack.c.b16 %v1125, %v1123
    %v1134 = vpack.c.b16 %v1126, %v1124
    %v1144 = vsel %vm957, %v1088, 0
    %1146 = vmatpush.bf16.msra.mxu0 0
    %1147 = vmatpush.bf16.msra.mxu0 0
    %1148 = vmatpush.bf16.msra.mxu0 0
    %1149 = vmatpush.bf16.msra.mxu0 0
    %1150 = vmatpush.bf16.msra.mxu0 %v1133
    %1151 = vmatpush.bf16.msra.mxu0 %v1131
    %1152 = vmatpush.bf16.msra.mxu0 %v1129
    %1153 = vmatpush.bf16.msra.mxu0 %v1127
    %1154 = vmatmul.bf16.gmra.mxu0 %v1144
    %v1155 = vpop.f32.mrf.mxu0
    %v1156 = vadd.f32 %v1099, %v1155
    %v1157 = vpop.f32.mrf.mxu0
    %1158 = vdwg.mxu0
    %1159 = vmatpush.bf16.msra.mxu0 0
    %1160 = vmatpush.bf16.msra.mxu0 0
    %1161 = vmatpush.bf16.msra.mxu0 0
    %1162 = vmatpush.bf16.msra.mxu0 0
    %1163 = vmatpush.bf16.msra.mxu0 %v1134
    %1164 = vmatpush.bf16.msra.mxu0 %v1132
    %1165 = vmatpush.bf16.msra.mxu0 %v1130
    %1166 = vmatpush.bf16.msra.mxu0 %v1128
    %1167 = vmatmul.bf16.gmra.mxu0 %v1144
    %v1168 = vpop.f32.mrf.mxu0
    %v1169 = vadd.f32 %v1100, %v1168
    %v1170 = vpop.f32.mrf.mxu0
    %1171 = vdwg.mxu0
    %v1172 = vpack.c.bf16 %v1169, %v1156
    %v1173 = vunpack.c.l.bf16 %v1172
    %v1174 = vunpack.c.h.bf16 %v1172
    %v1175 = vmax.f32 %v1173, 0.0
    %v1176 = vmax.f32 %v1174, 0.0
    %v1177 = vpack.c.bf16 %v1175, %v1175
    %v1178 = vpack.c.bf16 %v1176, %v1176
    %v1179 = vld [vmem:[#allocation4] sm:$0xff]
    %v1180 = vld [vmem:[#allocation4 + $0x8] sm:$0xff]
    %v1181 = vld [vmem:[#allocation4 + $0x10] sm:$0xff]
    %v1182 = vld [vmem:[#allocation4 + $0x18] sm:$0xff]
    %v1183 = vld [vmem:[#allocation4 + $0x20] sm:$0xff]
    %v1184 = vld [vmem:[#allocation4 + $0x28] sm:$0xff]
    %v1185 = vld [vmem:[#allocation4 + $0x30] sm:$0xff]
    %v1186 = vld [vmem:[#allocation4 + $0x38] sm:$0xff]
    %v1187 = vld [vmem:[#allocation4 + $0x40] sm:$0xff]
    %v1188 = vld [vmem:[#allocation4 + $0x48] sm:$0xff]
    %v1189 = vld [vmem:[#allocation4 + $0x50] sm:$0xff]
    %v1190 = vld [vmem:[#allocation4 + $0x58] sm:$0xff]
    %v1191 = vld [vmem:[#allocation4 + $0x60] sm:$0xff]
    %v1192 = vld [vmem:[#allocation4 + $0x68] sm:$0xff]
    %v1193 = vld [vmem:[#allocation4 + $0x70] sm:$0xff]
    %v1194 = vld [vmem:[#allocation4 + $0x78] sm:$0xff]
    %v1195 = vld [vmem:[#allocation4 + $0x80] sm:$0xff]
    %v1196 = vld [vmem:[#allocation4 + $0x88] sm:$0xff]
    %v1197 = vld [vmem:[#allocation4 + $0x90] sm:$0xff]
    %v1198 = vld [vmem:[#allocation4 + $0x98] sm:$0xff]
    %v1199 = vld [vmem:[#allocation4 + $0xa0] sm:$0xff]
    %v1200 = vld [vmem:[#allocation4 + $0xa8] sm:$0xff]
    %v1201 = vld [vmem:[#allocation4 + $0xb0] sm:$0xff]
    %v1202 = vld [vmem:[#allocation4 + $0xb8] sm:$0xff]
    %v1203 = vld [vmem:[#allocation4 + $0xc0] sm:$0xff]
    %v1204 = vld [vmem:[#allocation4 + $0xc8] sm:$0xff]
    %v1205 = vld [vmem:[#allocation4 + $0xd0] sm:$0xff]
    %v1206 = vld [vmem:[#allocation4 + $0xd8] sm:$0xff]
    %v1207 = vld [vmem:[#allocation4 + $0xe0] sm:$0xff]
    %v1208 = vld [vmem:[#allocation4 + $0xe8] sm:$0xff]
    %v1209 = vld [vmem:[#allocation4 + $0xf0] sm:$0xff]
    %v1210 = vld [vmem:[#allocation4 + $0xf8] sm:$0xff]
    %v1211 = vld [vmem:[#allocation4 + $0x100] sm:$0xff]
    %v1212 = vld [vmem:[#allocation4 + $0x108] sm:$0xff]
    %v1213 = vld [vmem:[#allocation4 + $0x110] sm:$0xff]
    %v1214 = vld [vmem:[#allocation4 + $0x118] sm:$0xff]
    %v1215 = vld [vmem:[#allocation4 + $0x120] sm:$0xff]
    %v1216 = vld [vmem:[#allocation4 + $0x128] sm:$0xff]
    %v1217 = vld [vmem:[#allocation4 + $0x130] sm:$0xff]
    %v1218 = vld [vmem:[#allocation4 + $0x138] sm:$0xff]
    %v1219 = vld [vmem:[#allocation4 + $0x140] sm:$0xff]
    %v1220 = vld [vmem:[#allocation4 + $0x148] sm:$0xff]
    %v1221 = vld [vmem:[#allocation4 + $0x150] sm:$0xff]
    %v1222 = vld [vmem:[#allocation4 + $0x158] sm:$0xff]
    %v1223 = vld [vmem:[#allocation4 + $0x160] sm:$0xff]
    %v1224 = vld [vmem:[#allocation4 + $0x168] sm:$0xff]
    %v1225 = vld [vmem:[#allocation4 + $0x170] sm:$0xff]
    %v1226 = vld [vmem:[#allocation4 + $0x178] sm:$0xff]
    %v1227 = vld [vmem:[#allocation4 + $0x180] sm:$0xff]
    %v1228 = vld [vmem:[#allocation4 + $0x188] sm:$0xff]
    %v1229 = vld [vmem:[#allocation4 + $0x190] sm:$0xff]
    %v1230 = vld [vmem:[#allocation4 + $0x198] sm:$0xff]
    %v1231 = vld [vmem:[#allocation4 + $0x1a0] sm:$0xff]
    %v1232 = vld [vmem:[#allocation4 + $0x1a8] sm:$0xff]
    %v1233 = vld [vmem:[#allocation4 + $0x1b0] sm:$0xff]
    %v1234 = vld [vmem:[#allocation4 + $0x1b8] sm:$0xff]
    %v1235 = vld [vmem:[#allocation4 + $0x1c0] sm:$0xff]
    %v1236 = vld [vmem:[#allocation4 + $0x1c8] sm:$0xff]
    %v1237 = vld [vmem:[#allocation4 + $0x1d0] sm:$0xff]
    %v1238 = vld [vmem:[#allocation4 + $0x1d8] sm:$0xff]
    %v1239 = vld [vmem:[#allocation4 + $0x1e0] sm:$0xff]
    %v1240 = vld [vmem:[#allocation4 + $0x1e8] sm:$0xff]
    %v1241 = vld [vmem:[#allocation4 + $0x1f0] sm:$0xff]
    %v1242 = vld [vmem:[#allocation4 + $0x1f8] sm:$0xff]
    %v1243 = vld [vmem:[%s18] sm:$0xf]
    %v1245 = vperm.slane %v1243, 0
    %v1246 = vperm.slane %v1243, 1
    %v1247 = vperm.slane %v1243, 2
    %v1248 = vperm.slane %v1243, 3
    %v1317 = vunpack.c.l.b16 %v1179
    %v1318 = vunpack.c.h.b16 %v1179
    %v1319 = vunpack.c.l.b16 %v1180
    %v1320 = vunpack.c.h.b16 %v1180
    %v1321 = vunpack.c.l.b16 %v1181
    %v1322 = vunpack.c.h.b16 %v1181
    %v1323 = vunpack.c.l.b16 %v1182
    %v1324 = vunpack.c.h.b16 %v1182
    %v1325 = vunpack.c.l.b16 %v1183
    %v1326 = vunpack.c.h.b16 %v1183
    %v1327 = vunpack.c.l.b16 %v1184
    %v1328 = vunpack.c.h.b16 %v1184
    %v1329 = vunpack.c.l.b16 %v1185
    %v1330 = vunpack.c.h.b16 %v1185
    %v1331 = vunpack.c.l.b16 %v1186
    %v1332 = vunpack.c.h.b16 %v1186
    %v1333 = vunpack.c.l.b16 %v1187
    %v1334 = vunpack.c.h.b16 %v1187
    %v1335 = vunpack.c.l.b16 %v1188
    %v1336 = vunpack.c.h.b16 %v1188
    %v1337 = vunpack.c.l.b16 %v1189
    %v1338 = vunpack.c.h.b16 %v1189
    %v1339 = vunpack.c.l.b16 %v1190
    %v1340 = vunpack.c.h.b16 %v1190
    %v1341 = vunpack.c.l.b16 %v1191
    %v1342 = vunpack.c.h.b16 %v1191
    %v1343 = vunpack.c.l.b16 %v1192
    %v1344 = vunpack.c.h.b16 %v1192
    %v1345 = vunpack.c.l.b16 %v1193
    %v1346 = vunpack.c.h.b16 %v1193
    %v1347 = vunpack.c.l.b16 %v1194
    %v1348 = vunpack.c.h.b16 %v1194
    %v1349 = vunpack.c.l.b16 %v1195
    %v1350 = vunpack.c.h.b16 %v1195
    %v1351 = vunpack.c.l.b16 %v1196
    %v1352 = vunpack.c.h.b16 %v1196
    %v1353 = vunpack.c.l.b16 %v1197
    %v1354 = vunpack.c.h.b16 %v1197
    %v1355 = vunpack.c.l.b16 %v1198
    %v1356 = vunpack.c.h.b16 %v1198
    %v1357 = vunpack.c.l.b16 %v1199
    %v1358 = vunpack.c.h.b16 %v1199
    %v1359 = vunpack.c.l.b16 %v1200
    %v1360 = vunpack.c.h.b16 %v1200
    %v1361 = vunpack.c.l.b16 %v1201
    %v1362 = vunpack.c.h.b16 %v1201
    %v1363 = vunpack.c.l.b16 %v1202
    %v1364 = vunpack.c.h.b16 %v1202
    %v1365 = vunpack.c.l.b16 %v1203
    %v1366 = vunpack.c.h.b16 %v1203
    %v1367 = vunpack.c.l.b16 %v1204
    %v1368 = vunpack.c.h.b16 %v1204
    %v1369 = vunpack.c.l.b16 %v1205
    %v1370 = vunpack.c.h.b16 %v1205
    %v1371 = vunpack.c.l.b16 %v1206
    %v1372 = vunpack.c.h.b16 %v1206
    %v1373 = vunpack.c.l.b16 %v1207
    %v1374 = vunpack.c.h.b16 %v1207
    %v1375 = vunpack.c.l.b16 %v1208
    %v1376 = vunpack.c.h.b16 %v1208
    %v1377 = vunpack.c.l.b16 %v1209
    %v1378 = vunpack.c.h.b16 %v1209
    %v1379 = vunpack.c.l.b16 %v1210
    %v1380 = vunpack.c.h.b16 %v1210
    %v1381 = vunpack.c.l.b16 %v1211
    %v1382 = vunpack.c.h.b16 %v1211
    %v1383 = vunpack.c.l.b16 %v1212
    %v1384 = vunpack.c.h.b16 %v1212
    %v1385 = vunpack.c.l.b16 %v1213
    %v1386 = vunpack.c.h.b16 %v1213
    %v1387 = vunpack.c.l.b16 %v1214
    %v1388 = vunpack.c.h.b16 %v1214
    %v1389 = vunpack.c.l.b16 %v1215
    %v1390 = vunpack.c.h.b16 %v1215
    %v1391 = vunpack.c.l.b16 %v1216
    %v1392 = vunpack.c.h.b16 %v1216
    %v1393 = vunpack.c.l.b16 %v1217
    %v1394 = vunpack.c.h.b16 %v1217
    %v1395 = vunpack.c.l.b16 %v1218
    %v1396 = vunpack.c.h.b16 %v1218
    %v1397 = vunpack.c.l.b16 %v1219
    %v1398 = vunpack.c.h.b16 %v1219
    %v1399 = vunpack.c.l.b16 %v1220
    %v1400 = vunpack.c.h.b16 %v1220
    %v1401 = vunpack.c.l.b16 %v1221
    %v1402 = vunpack.c.h.b16 %v1221
    %v1403 = vunpack.c.l.b16 %v1222
    %v1404 = vunpack.c.h.b16 %v1222
    %v1405 = vunpack.c.l.b16 %v1223
    %v1406 = vunpack.c.h.b16 %v1223
    %v1407 = vunpack.c.l.b16 %v1224
    %v1408 = vunpack.c.h.b16 %v1224
    %v1409 = vunpack.c.l.b16 %v1225
    %v1410 = vunpack.c.h.b16 %v1225
    %v1411 = vunpack.c.l.b16 %v1226
    %v1412 = vunpack.c.h.b16 %v1226
    %v1413 = vunpack.c.l.b16 %v1227
    %v1414 = vunpack.c.h.b16 %v1227
    %v1415 = vunpack.c.l.b16 %v1228
    %v1416 = vunpack.c.h.b16 %v1228
    %v1417 = vunpack.c.l.b16 %v1229
    %v1418 = vunpack.c.h.b16 %v1229
    %v1419 = vunpack.c.l.b16 %v1230
    %v1420 = vunpack.c.h.b16 %v1230
    %v1421 = vunpack.c.l.b16 %v1231
    %v1422 = vunpack.c.h.b16 %v1231
    %v1423 = vunpack.c.l.b16 %v1232
    %v1424 = vunpack.c.h.b16 %v1232
    %v1425 = vunpack.c.l.b16 %v1233
    %v1426 = vunpack.c.h.b16 %v1233
    %v1427 = vunpack.c.l.b16 %v1234
    %v1428 = vunpack.c.h.b16 %v1234
    %v1429 = vunpack.c.l.b16 %v1235
    %v1430 = vunpack.c.h.b16 %v1235
    %v1431 = vunpack.c.l.b16 %v1236
    %v1432 = vunpack.c.h.b16 %v1236
    %v1433 = vunpack.c.l.b16 %v1237
    %v1434 = vunpack.c.h.b16 %v1237
    %v1435 = vunpack.c.l.b16 %v1238
    %v1436 = vunpack.c.h.b16 %v1238
    %v1437 = vunpack.c.l.b16 %v1239
    %v1438 = vunpack.c.h.b16 %v1239
    %v1439 = vunpack.c.l.b16 %v1240
    %v1440 = vunpack.c.h.b16 %v1240
    %v1441 = vunpack.c.l.b16 %v1241
    %v1442 = vunpack.c.h.b16 %v1241
    %v1443 = vunpack.c.l.b16 %v1242
    %v1444 = vunpack.c.h.b16 %v1242
    %v1445 = vpack.c.b16 %v1321, %v1317
    %v1446 = vpack.c.b16 %v1322, %v1318
    %v1447 = vpack.c.b16 %v1323, %v1319
    %v1448 = vpack.c.b16 %v1324, %v1320
    %v1449 = vpack.c.b16 %v1329, %v1325
    %v1450 = vpack.c.b16 %v1330, %v1326
    %v1451 = vpack.c.b16 %v1331, %v1327
    %v1452 = vpack.c.b16 %v1332, %v1328
    %v1453 = vpack.c.b16 %v1337, %v1333
    %v1454 = vpack.c.b16 %v1338, %v1334
    %v1455 = vpack.c.b16 %v1339, %v1335
    %v1456 = vpack.c.b16 %v1340, %v1336
    %v1457 = vpack.c.b16 %v1345, %v1341
    %v1458 = vpack.c.b16 %v1346, %v1342
    %v1459 = vpack.c.b16 %v1347, %v1343
    %v1460 = vpack.c.b16 %v1348, %v1344
    %v1461 = vpack.c.b16 %v1353, %v1349
    %v1462 = vpack.c.b16 %v1354, %v1350
    %v1463 = vpack.c.b16 %v1355, %v1351
    %v1464 = vpack.c.b16 %v1356, %v1352
    %v1465 = vpack.c.b16 %v1361, %v1357
    %v1466 = vpack.c.b16 %v1362, %v1358
    %v1467 = vpack.c.b16 %v1363, %v1359
    %v1468 = vpack.c.b16 %v1364, %v1360
    %v1469 = vpack.c.b16 %v1369, %v1365
    %v1470 = vpack.c.b16 %v1370, %v1366
    %v1471 = vpack.c.b16 %v1371, %v1367
    %v1472 = vpack.c.b16 %v1372, %v1368
    %v1473 = vpack.c.b16 %v1377, %v1373
    %v1474 = vpack.c.b16 %v1378, %v1374
    %v1475 = vpack.c.b16 %v1379, %v1375
    %v1476 = vpack.c.b16 %v1380, %v1376
    %v1477 = vpack.c.b16 %v1385, %v1381
    %v1478 = vpack.c.b16 %v1386, %v1382
    %v1479 = vpack.c.b16 %v1387, %v1383
    %v1480 = vpack.c.b16 %v1388, %v1384
    %v1481 = vpack.c.b16 %v1393, %v1389
    %v1482 = vpack.c.b16 %v1394, %v1390
    %v1483 = vpack.c.b16 %v1395, %v1391
    %v1484 = vpack.c.b16 %v1396, %v1392
    %v1485 = vpack.c.b16 %v1401, %v1397
    %v1486 = vpack.c.b16 %v1402, %v1398
    %v1487 = vpack.c.b16 %v1403, %v1399
    %v1488 = vpack.c.b16 %v1404, %v1400
    %v1489 = vpack.c.b16 %v1409, %v1405
    %v1490 = vpack.c.b16 %v1410, %v1406
    %v1491 = vpack.c.b16 %v1411, %v1407
    %v1492 = vpack.c.b16 %v1412, %v1408
    %v1493 = vpack.c.b16 %v1417, %v1413
    %v1494 = vpack.c.b16 %v1418, %v1414
    %v1495 = vpack.c.b16 %v1419, %v1415
    %v1496 = vpack.c.b16 %v1420, %v1416
    %v1497 = vpack.c.b16 %v1425, %v1421
    %v1498 = vpack.c.b16 %v1426, %v1422
    %v1499 = vpack.c.b16 %v1427, %v1423
    %v1500 = vpack.c.b16 %v1428, %v1424
    %v1501 = vpack.c.b16 %v1433, %v1429
    %v1502 = vpack.c.b16 %v1434, %v1430
    %v1503 = vpack.c.b16 %v1435, %v1431
    %v1504 = vpack.c.b16 %v1436, %v1432
    %v1505 = vpack.c.b16 %v1441, %v1437
    %v1506 = vpack.c.b16 %v1442, %v1438
    %v1507 = vpack.c.b16 %v1443, %v1439
    %v1508 = vpack.c.b16 %v1444, %v1440
    %1573 = vmatpush.bf16.msra.mxu0 %v1473
    %1574 = vmatpush.bf16.msra.mxu0 %v1469
    %1575 = vmatpush.bf16.msra.mxu0 %v1465
    %1576 = vmatpush.bf16.msra.mxu0 %v1461
    %1577 = vmatpush.bf16.msra.mxu0 %v1457
    %1578 = vmatpush.bf16.msra.mxu0 %v1453
    %1579 = vmatpush.bf16.msra.mxu0 %v1449
    %1580 = vmatpush.bf16.msra.mxu0 %v1445
    %1581 = vmatmul.bf16.gmra.mxu0 %v1177
    %v1582 = vpop.f32.mrf.mxu0
    %v1583 = vadd.f32 %v1245, %v1582
    %v1584 = vpop.f32.mrf.mxu0
    %1585 = vdwg.mxu0
    %1586 = vmatpush.bf16.msra.mxu0 %v1505
    %1587 = vmatpush.bf16.msra.mxu0 %v1501
    %1588 = vmatpush.bf16.msra.mxu0 %v1497
    %1589 = vmatpush.bf16.msra.mxu0 %v1493
    %1590 = vmatpush.bf16.msra.mxu0 %v1489
    %1591 = vmatpush.bf16.msra.mxu0 %v1485
    %1592 = vmatpush.bf16.msra.mxu0 %v1481
    %1593 = vmatpush.bf16.msra.mxu0 %v1477
    %1594 = vmatmul.bf16.gmra.mxu0 %v1178
    %v1595 = vpop.f32.mrf.mxu0
    %v1596 = vadd.f32 %v1583, %v1595
    %v1597 = vpop.f32.mrf.mxu0
    %1598 = vdwg.mxu0
    %1599 = vmatpush.bf16.msra.mxu0 %v1474
    %1600 = vmatpush.bf16.msra.mxu0 %v1470
    %1601 = vmatpush.bf16.msra.mxu0 %v1466
    %1602 = vmatpush.bf16.msra.mxu0 %v1462
    %1603 = vmatpush.bf16.msra.mxu0 %v1458
    %1604 = vmatpush.bf16.msra.mxu0 %v1454
    %1605 = vmatpush.bf16.msra.mxu0 %v1450
    %1606 = vmatpush.bf16.msra.mxu0 %v1446
    %1607 = vmatmul.bf16.gmra.mxu0 %v1177
    %v1608 = vpop.f32.mrf.mxu0
    %v1609 = vadd.f32 %v1246, %v1608
    %v1610 = vpop.f32.mrf.mxu0
    %1611 = vdwg.mxu0
    %1612 = vmatpush.bf16.msra.mxu0 %v1506
    %1613 = vmatpush.bf16.msra.mxu0 %v1502
    %1614 = vmatpush.bf16.msra.mxu0 %v1498
    %1615 = vmatpush.bf16.msra.mxu0 %v1494
    %1616 = vmatpush.bf16.msra.mxu0 %v1490
    %1617 = vmatpush.bf16.msra.mxu0 %v1486
    %1618 = vmatpush.bf16.msra.mxu0 %v1482
    %1619 = vmatpush.bf16.msra.mxu0 %v1478
    %1620 = vmatmul.bf16.gmra.mxu0 %v1178
    %v1621 = vpop.f32.mrf.mxu0
    %v1622 = vadd.f32 %v1609, %v1621
    %v1623 = vpop.f32.mrf.mxu0
    %1624 = vdwg.mxu0
    %1625 = vmatpush.bf16.msra.mxu0 %v1475
    %1626 = vmatpush.bf16.msra.mxu0 %v1471
    %1627 = vmatpush.bf16.msra.mxu0 %v1467
    %1628 = vmatpush.bf16.msra.mxu0 %v1463
    %1629 = vmatpush.bf16.msra.mxu0 %v1459
    %1630 = vmatpush.bf16.msra.mxu0 %v1455
    %1631 = vmatpush.bf16.msra.mxu0 %v1451
    %1632 = vmatpush.bf16.msra.mxu0 %v1447
    %1633 = vmatmul.bf16.gmra.mxu0 %v1177
    %v1634 = vpop.f32.mrf.mxu0
    %v1635 = vadd.f32 %v1247, %v1634
    %v1636 = vpop.f32.mrf.mxu0
    %1637 = vdwg.mxu0
    %1638 = vmatpush.bf16.msra.mxu0 %v1507
    %1639 = vmatpush.bf16.msra.mxu0 %v1503
    %1640 = vmatpush.bf16.msra.mxu0 %v1499
    %1641 = vmatpush.bf16.msra.mxu0 %v1495
    %1642 = vmatpush.bf16.msra.mxu0 %v1491
    %1643 = vmatpush.bf16.msra.mxu0 %v1487
    %1644 = vmatpush.bf16.msra.mxu0 %v1483
    %1645 = vmatpush.bf16.msra.mxu0 %v1479
    %1646 = vmatmul.bf16.gmra.mxu0 %v1178
    %v1647 = vpop.f32.mrf.mxu0
    %v1648 = vadd.f32 %v1635, %v1647
    %v1649 = vpop.f32.mrf.mxu0
    %1650 = vdwg.mxu0
    %1651 = vmatpush.bf16.msra.mxu0 %v1476
    %1652 = vmatpush.bf16.msra.mxu0 %v1472
    %1653 = vmatpush.bf16.msra.mxu0 %v1468
    %1654 = vmatpush.bf16.msra.mxu0 %v1464
    %1655 = vmatpush.bf16.msra.mxu0 %v1460
    %1656 = vmatpush.bf16.msra.mxu0 %v1456
    %1657 = vmatpush.bf16.msra.mxu0 %v1452
    %1658 = vmatpush.bf16.msra.mxu0 %v1448
    %1659 = vmatmul.bf16.gmra.mxu0 %v1177
    %v1660 = vpop.f32.mrf.mxu0
    %v1661 = vadd.f32 %v1248, %v1660
    %v1662 = vpop.f32.mrf.mxu0
    %1663 = vdwg.mxu0
    %1664 = vmatpush.bf16.msra.mxu0 %v1508
    %1665 = vmatpush.bf16.msra.mxu0 %v1504
    %1666 = vmatpush.bf16.msra.mxu0 %v1500
    %1667 = vmatpush.bf16.msra.mxu0 %v1496
    %1668 = vmatpush.bf16.msra.mxu0 %v1492
    %1669 = vmatpush.bf16.msra.mxu0 %v1488
    %1670 = vmatpush.bf16.msra.mxu0 %v1484
    %1671 = vmatpush.bf16.msra.mxu0 %v1480
    %1672 = vmatmul.bf16.gmra.mxu0 %v1178
    %v1673 = vpop.f32.mrf.mxu0
    %v1674 = vadd.f32 %v1661, %v1673
    %v1675 = vpop.f32.mrf.mxu0
    %1676 = vdwg.mxu0
    %v1677 = vpack.c.bf16 %v1622, %v1596
    %v1678 = vpack.c.bf16 %v1674, %v1648
    %v1679 = vunpack.c.l.bf16 %v1677
    %v1680 = vunpack.c.h.bf16 %v1677
    %v1681 = vunpack.c.l.bf16 %v1678
    %v1682 = vunpack.c.h.bf16 %v1678
    %v1683 = vmax.f32 %v1679, 0.0
    %v1684 = vmax.f32 %v1680, 0.0
    %v1685 = vmax.f32 %v1681, 0.0
    %v1686 = vmax.f32 %v1682, 0.0
    %v1687 = vpack.c.bf16 %v1683, %v1683
    %v1688 = vpack.c.bf16 %v1684, %v1684
    %v1689 = vpack.c.bf16 %v1685, %v1685
    %v1690 = vpack.c.bf16 %v1686, %v1686
    %v1691 = vld [vmem:[%s19] sm:$0xf]
    %v1692 = vld [vmem:[%s19 + $0x4] sm:$0xf]
    %v1693 = vld [vmem:[%s19 + $0x8] sm:$0xf]
    %v1694 = vld [vmem:[%s19 + $0xc] sm:$0xf]
    %v1695 = vld [vmem:[%s19 + $0x10] sm:$0xf]
    %v1696 = vld [vmem:[%s19 + $0x14] sm:$0xf]
    %v1697 = vld [vmem:[%s19 + $0x18] sm:$0xf]
    %v1698 = vld [vmem:[%s19 + $0x1c] sm:$0xf]
    %v1699 = vld [vmem:[%s19 + $0x20] sm:$0xf]
    %v1700 = vld [vmem:[%s19 + $0x24] sm:$0xf]
    %v1701 = vld [vmem:[%s19 + $0x28] sm:$0xf]
    %v1702 = vld [vmem:[%s19 + $0x2c] sm:$0xf]
    %v1703 = vld [vmem:[%s19 + $0x30] sm:$0xf]
    %v1704 = vld [vmem:[%s19 + $0x34] sm:$0xf]
    %v1705 = vld [vmem:[%s19 + $0x38] sm:$0xf]
    %v1706 = vld [vmem:[%s19 + $0x3c] sm:$0xf]
    %v1707 = vld [vmem:[%s19 + $0x40] sm:$0xf]
    %v1708 = vld [vmem:[%s19 + $0x44] sm:$0xf]
    %v1709 = vld [vmem:[%s19 + $0x48] sm:$0xf]
    %v1710 = vld [vmem:[%s19 + $0x4c] sm:$0xf]
    %v1711 = vld [vmem:[%s19 + $0x50] sm:$0xf]
    %v1712 = vld [vmem:[%s19 + $0x54] sm:$0xf]
    %v1713 = vld [vmem:[%s19 + $0x58] sm:$0xf]
    %v1714 = vld [vmem:[%s19 + $0x5c] sm:$0xf]
    %v1715 = vld [vmem:[%s19 + $0x60] sm:$0xf]
    %v1716 = vld [vmem:[%s19 + $0x64] sm:$0xf]
    %v1717 = vld [vmem:[%s19 + $0x68] sm:$0xf]
    %v1718 = vld [vmem:[%s19 + $0x6c] sm:$0xf]
    %v1719 = vld [vmem:[%s19 + $0x70] sm:$0xf]
    %v1720 = vld [vmem:[%s19 + $0x74] sm:$0xf]
    %v1721 = vld [vmem:[%s19 + $0x78] sm:$0xf]
    %v1722 = vld [vmem:[%s19 + $0x7c] sm:$0xf]
    %v1723 = vld [vmem:[%s19 + $0x80] sm:$0xf]
    %v1724 = vld [vmem:[%s19 + $0x84] sm:$0xf]
    %v1725 = vld [vmem:[%s19 + $0x88] sm:$0xf]
    %v1726 = vld [vmem:[%s19 + $0x8c] sm:$0xf]
    %v1727 = vld [vmem:[%s19 + $0x90] sm:$0xf]
    %v1728 = vld [vmem:[%s19 + $0x94] sm:$0xf]
    %v1729 = vld [vmem:[%s19 + $0x98] sm:$0xf]
    %v1730 = vld [vmem:[%s19 + $0x9c] sm:$0xf]
    %v1731 = vld [vmem:[%s19 + $0xa0] sm:$0xf]
    %v1732 = vld [vmem:[%s19 + $0xa4] sm:$0xf]
    %v1733 = vld [vmem:[%s19 + $0xa8] sm:$0xf]
    %v1734 = vld [vmem:[%s19 + $0xac] sm:$0xf]
    %v1735 = vld [vmem:[%s19 + $0xb0] sm:$0xf]
    %v1736 = vld [vmem:[%s19 + $0xb4] sm:$0xf]
    %v1737 = vld [vmem:[%s19 + $0xb8] sm:$0xf]
    %v1738 = vld [vmem:[%s19 + $0xbc] sm:$0xf]
    %v1739 = vld [vmem:[%s19 + $0xc0] sm:$0xf]
    %v1740 = vld [vmem:[%s19 + $0xc4] sm:$0xf]
    %v1741 = vld [vmem:[%s19 + $0xc8] sm:$0xf]
    %v1742 = vld [vmem:[%s19 + $0xcc] sm:$0xf]
    %v1743 = vld [vmem:[%s19 + $0xd0] sm:$0xf]
    %v1744 = vld [vmem:[%s19 + $0xd4] sm:$0xf]
    %v1745 = vld [vmem:[%s19 + $0xd8] sm:$0xf]
    %v1746 = vld [vmem:[%s19 + $0xdc] sm:$0xf]
    %v1747 = vld [vmem:[%s19 + $0xe0] sm:$0xf]
    %v1748 = vld [vmem:[%s19 + $0xe4] sm:$0xf]
    %v1749 = vld [vmem:[%s19 + $0xe8] sm:$0xf]
    %v1750 = vld [vmem:[%s19 + $0xec] sm:$0xf]
    %v1751 = vld [vmem:[%s19 + $0xf0] sm:$0xf]
    %v1752 = vld [vmem:[%s19 + $0xf4] sm:$0xf]
    %v1753 = vld [vmem:[%s19 + $0xf8] sm:$0xf]
    %v1754 = vld [vmem:[%s19 + $0xfc] sm:$0xf]
    %v1755 = vld [vmem:[%s20] sm:$0x1]
    %v1757 = vperm.slane %v1755, 0
    %v1823 = vunpack.c.l.b16 %v1691
    %v1824 = vunpack.c.l.b16 %v1692
    %v1825 = vunpack.c.l.b16 %v1693
    %v1826 = vunpack.c.l.b16 %v1694
    %v1827 = vunpack.c.l.b16 %v1695
    %v1828 = vunpack.c.l.b16 %v1696
    %v1829 = vunpack.c.l.b16 %v1697
    %v1830 = vunpack.c.l.b16 %v1698
    %v1831 = vunpack.c.l.b16 %v1699
    %v1832 = vunpack.c.l.b16 %v1700
    %v1833 = vunpack.c.l.b16 %v1701
    %v1834 = vunpack.c.l.b16 %v1702
    %v1835 = vunpack.c.l.b16 %v1703
    %v1836 = vunpack.c.l.b16 %v1704
    %v1837 = vunpack.c.l.b16 %v1705
    %v1838 = vunpack.c.l.b16 %v1706
    %v1839 = vunpack.c.l.b16 %v1707
    %v1840 = vunpack.c.l.b16 %v1708
    %v1841 = vunpack.c.l.b16 %v1709
    %v1842 = vunpack.c.l.b16 %v1710
    %v1843 = vunpack.c.l.b16 %v1711
    %v1844 = vunpack.c.l.b16 %v1712
    %v1845 = vunpack.c.l.b16 %v1713
    %v1846 = vunpack.c.l.b16 %v1714
    %v1847 = vunpack.c.l.b16 %v1715
    %v1848 = vunpack.c.l.b16 %v1716
    %v1849 = vunpack.c.l.b16 %v1717
    %v1850 = vunpack.c.l.b16 %v1718
    %v1851 = vunpack.c.l.b16 %v1719
    %v1852 = vunpack.c.l.b16 %v1720
    %v1853 = vunpack.c.l.b16 %v1721
    %v1854 = vunpack.c.l.b16 %v1722
    %v1855 = vunpack.c.l.b16 %v1723
    %v1856 = vunpack.c.l.b16 %v1724
    %v1857 = vunpack.c.l.b16 %v1725
    %v1858 = vunpack.c.l.b16 %v1726
    %v1859 = vunpack.c.l.b16 %v1727
    %v1860 = vunpack.c.l.b16 %v1728
    %v1861 = vunpack.c.l.b16 %v1729
    %v1862 = vunpack.c.l.b16 %v1730
    %v1863 = vunpack.c.l.b16 %v1731
    %v1864 = vunpack.c.l.b16 %v1732
    %v1865 = vunpack.c.l.b16 %v1733
    %v1866 = vunpack.c.l.b16 %v1734
    %v1867 = vunpack.c.l.b16 %v1735
    %v1868 = vunpack.c.l.b16 %v1736
    %v1869 = vunpack.c.l.b16 %v1737
    %v1870 = vunpack.c.l.b16 %v1738
    %v1871 = vunpack.c.l.b16 %v1739
    %v1872 = vunpack.c.l.b16 %v1740
    %v1873 = vunpack.c.l.b16 %v1741
    %v1874 = vunpack.c.l.b16 %v1742
    %v1875 = vunpack.c.l.b16 %v1743
    %v1876 = vunpack.c.l.b16 %v1744
    %v1877 = vunpack.c.l.b16 %v1745
    %v1878 = vunpack.c.l.b16 %v1746
    %v1879 = vunpack.c.l.b16 %v1747
    %v1880 = vunpack.c.l.b16 %v1748
    %v1881 = vunpack.c.l.b16 %v1749
    %v1882 = vunpack.c.l.b16 %v1750
    %v1883 = vunpack.c.l.b16 %v1751
    %v1884 = vunpack.c.l.b16 %v1752
    %v1885 = vunpack.c.l.b16 %v1753
    %v1886 = vunpack.c.l.b16 %v1754
    %v1887 = vpack.c.b16 %v1824, %v1823
    %v1888 = vpack.c.b16 %v1826, %v1825
    %v1889 = vpack.c.b16 %v1828, %v1827
    %v1890 = vpack.c.b16 %v1830, %v1829
    %v1891 = vpack.c.b16 %v1832, %v1831
    %v1892 = vpack.c.b16 %v1834, %v1833
    %v1893 = vpack.c.b16 %v1836, %v1835
    %v1894 = vpack.c.b16 %v1838, %v1837
    %v1895 = vpack.c.b16 %v1840, %v1839
    %v1896 = vpack.c.b16 %v1842, %v1841
    %v1897 = vpack.c.b16 %v1844, %v1843
    %v1898 = vpack.c.b16 %v1846, %v1845
    %v1899 = vpack.c.b16 %v1848, %v1847
    %v1900 = vpack.c.b16 %v1850, %v1849
    %v1901 = vpack.c.b16 %v1852, %v1851
    %v1902 = vpack.c.b16 %v1854, %v1853
    %v1903 = vpack.c.b16 %v1856, %v1855
    %v1904 = vpack.c.b16 %v1858, %v1857
    %v1905 = vpack.c.b16 %v1860, %v1859
    %v1906 = vpack.c.b16 %v1862, %v1861
    %v1907 = vpack.c.b16 %v1864, %v1863
    %v1908 = vpack.c.b16 %v1866, %v1865
    %v1909 = vpack.c.b16 %v1868, %v1867
    %v1910 = vpack.c.b16 %v1870, %v1869
    %v1911 = vpack.c.b16 %v1872, %v1871
    %v1912 = vpack.c.b16 %v1874, %v1873
    %v1913 = vpack.c.b16 %v1876, %v1875
    %v1914 = vpack.c.b16 %v1878, %v1877
    %v1915 = vpack.c.b16 %v1880, %v1879
    %v1916 = vpack.c.b16 %v1882, %v1881
    %v1917 = vpack.c.b16 %v1884, %v1883
    %v1918 = vpack.c.b16 %v1886, %v1885
    %1951 = vmatpush.bf16.msra.mxu0 %v1894
    %1952 = vmatpush.bf16.msra.mxu0 %v1893
    %1953 = vmatpush.bf16.msra.mxu0 %v1892
    %1954 = vmatpush.bf16.msra.mxu0 %v1891
    %1955 = vmatpush.bf16.msra.mxu0 %v1890
    %1956 = vmatpush.bf16.msra.mxu0 %v1889
    %1957 = vmatpush.bf16.msra.mxu0 %v1888
    %1958 = vmatpush.bf16.msra.mxu0 %v1887
    %1959 = vmatmul.bf16.gmra.mxu0 %v1687
    %v1960 = vpop.f32.mrf.mxu0
    %v1961 = vadd.f32 %v1757, %v1960
    %v1962 = vpop.f32.mrf.mxu0
    %1963 = vdwg.mxu0
    %1964 = vmatpush.bf16.msra.mxu0 %v1902
    %1965 = vmatpush.bf16.msra.mxu0 %v1901
    %1966 = vmatpush.bf16.msra.mxu0 %v1900
    %1967 = vmatpush.bf16.msra.mxu0 %v1899
    %1968 = vmatpush.bf16.msra.mxu0 %v1898
    %1969 = vmatpush.bf16.msra.mxu0 %v1897
    %1970 = vmatpush.bf16.msra.mxu0 %v1896
    %1971 = vmatpush.bf16.msra.mxu0 %v1895
    %1972 = vmatmul.bf16.gmra.mxu0 %v1688
    %v1973 = vpop.f32.mrf.mxu0
    %v1974 = vadd.f32 %v1961, %v1973
    %v1975 = vpop.f32.mrf.mxu0
    %1976 = vdwg.mxu0
    %1977 = vmatpush.bf16.msra.mxu0 %v1910
    %1978 = vmatpush.bf16.msra.mxu0 %v1909
    %1979 = vmatpush.bf16.msra.mxu0 %v1908
    %1980 = vmatpush.bf16.msra.mxu0 %v1907
    %1981 = vmatpush.bf16.msra.mxu0 %v1906
    %1982 = vmatpush.bf16.msra.mxu0 %v1905
    %1983 = vmatpush.bf16.msra.mxu0 %v1904
    %1984 = vmatpush.bf16.msra.mxu0 %v1903
    %1985 = vmatmul.bf16.gmra.mxu0 %v1689
    %v1986 = vpop.f32.mrf.mxu0
    %v1987 = vadd.f32 %v1974, %v1986
    %v1988 = vpop.f32.mrf.mxu0
    %1989 = vdwg.mxu0
    %1990 = vmatpush.bf16.msra.mxu0 %v1918
    %1991 = vmatpush.bf16.msra.mxu0 %v1917
    %1992 = vmatpush.bf16.msra.mxu0 %v1916
    %1993 = vmatpush.bf16.msra.mxu0 %v1915
    %1994 = vmatpush.bf16.msra.mxu0 %v1914
    %1995 = vmatpush.bf16.msra.mxu0 %v1913
    %1996 = vmatpush.bf16.msra.mxu0 %v1912
    %1997 = vmatpush.bf16.msra.mxu0 %v1911
    %1998 = vmatmul.bf16.gmra.mxu0 %v1690
    %v1999 = vpop.f32.mrf.mxu0
    %v2000 = vadd.f32 %v1987, %v1999
    %v2001 = vpop.f32.mrf.mxu0
    %2002 = vdwg.mxu0
    %2004 = vrot.lane.b32.xlu0 %v1004, 33
    %v2005 = vpop.permute.xlu0 %2004
    %v2007 = vsel %vm173, %v2000, %v2005
    %vm2008 = vcmask 351232
    %v2009 = vsel %vm2008, %v2007, %v2005
    %vm2010 = vcmask 433152
    %v2011 = vsel %vm2010, %v2009, 0.0
    %2012 = vst [vmem:[%s21] sm:$0xff] %v2011
    // Predicated region
    $region94: #{variational_forward.1} parent=1 // pred_check
      _
    $region95: #{variational_forward.1} parent=1 // pred_check_branch
      %2014 = sbr.rel (0) target = $region97
    $region96: #{variational_forward.1} parent=1 // pred_region
      _
    $region97: #{variational_forward.1} parent=1 // pred_fallthru
      _
    // Predicated region
    $region98: #{variational_forward.1} parent=1 // pred_check
      _
    $region99: #{variational_forward.1} parent=1 // pred_check_branch
      %2016 = sbr.rel (0) target = $region101
    $region100: #{variational_forward.1} parent=1 // pred_region
      _
    $region101: #{variational_forward.1} parent=1 // pred_fallthru
      _
    %2017 = vsyncpa [#allocation3], 1
    %2018 = vsyncpa [#allocation5], 1

</llo_original>
